<compile_context>
chip_gen: v5e
topology: v5e:2x2
jax: 0.10.0
libtpu: 0.0.40
codegen_flags: <defaults>
</compile_context>

<pallas_src>
import functools
import math

import jax
import jax.numpy as jnp
from jax.experimental import pallas as pl
from jax.experimental.pallas import tpu as pltpu

LN_EPS = 1e-5        # torch.nn.LayerNorm default
NEG_INF = -1e30      # finite "masked" value (TPU-safe)


def _row_tile(m):
    """Largest convenient row tile that divides m."""
    for t in (256, 128, 64, 32, 16, 8):
        if m % t == 0:
            return t
    return m


# ---------------------------------------------------------------- kernels ---
def _mha_kernel(xq_ref, xkv_ref, wq_ref, bq_ref, wkv_ref, bkv_ref,
                wo_ref, bo_ref, bias_ref, pad_ref, g_ref, b_ref, o_ref,
                *, h, d_k, d_v, scale):
    """Fused MHA + residual + LayerNorm + pad-mask for one batch element."""
    xq = xq_ref[0]                        # (Nq, D)
    xkv = xkv_ref[0]                      # (Nk, D)
    bias = bias_ref[0]                    # (Nq, Nk) additive mask (-1e30 / 0)

    # fused projections (K|V concatenated into one matmul)
    q = jnp.dot(xq, wq_ref[...], preferred_element_type=jnp.float32) + bq_ref[...]
    kv = jnp.dot(xkv, wkv_ref[...], preferred_element_type=jnp.float32) + bkv_ref[...]

    hk = h * d_k
    heads = []
    for i in range(h):                    # static unroll over heads
        qh = q[:, i * d_k:(i + 1) * d_k]                    # (Nq, d_k)
        kh = kv[:, i * d_k:(i + 1) * d_k]                   # (Nk, d_k)
        vh = kv[:, hk + i * d_v: hk + (i + 1) * d_v]        # (Nk, d_v)
        s = jax.lax.dot_general(qh, kh, (((1,), (1,)), ((), ())),
                                preferred_element_type=jnp.float32)
        s = s * scale + bias
        smax = jnp.max(s, axis=-1, keepdims=True)
        e = jnp.exp(s - smax)
        denom = jnp.sum(e, axis=-1, keepdims=True)
        p = e * pl.reciprocal(denom, approx=True)           # EUP, off VALU path
        heads.append(jnp.dot(p, vh, preferred_element_type=jnp.float32))
    att = jnp.concatenate(heads, axis=-1)                   # (Nq, h*d_v)

    y = jnp.dot(att, wo_ref[...], preferred_element_type=jnp.float32) + bo_ref[...]

    # residual + LayerNorm + pad mask (fused epilogue)
    z = xq + y
    mu = jnp.mean(z, axis=-1, keepdims=True)
    var = jnp.mean((z - mu) ** 2, axis=-1, keepdims=True)
    zn = (z - mu) * jax.lax.rsqrt(var + LN_EPS)
    o_ref[0] = (zn * g_ref[...] + b_ref[...]) * pad_ref[0]


def _ffn_kernel(x_ref, w1_ref, b1_ref, w2_ref, b2_ref, g_ref, b_ref,
                pad_ref, o_ref):
    """Fused PositionWiseFeedForward + residual + LayerNorm + pad-mask."""
    x = x_ref[...]
    hdn = jnp.dot(x, w1_ref[...], preferred_element_type=jnp.float32) + b1_ref[...]
    hdn = jnp.maximum(hdn, 0.0)
    f = jnp.dot(hdn, w2_ref[...], preferred_element_type=jnp.float32) + b2_ref[...]
    z = x + f
    mu = jnp.mean(z, axis=-1, keepdims=True)
    var = jnp.mean((z - mu) ** 2, axis=-1, keepdims=True)
    zn = (z - mu) * jax.lax.rsqrt(var + LN_EPS)
    o_ref[...] = (zn * g_ref[...] + b_ref[...]) * pad_ref[...]


def _fc_logsoftmax_kernel(x_ref, w_ref, o_ref):
    """Fused bias-free vocab projection + log_softmax epilogue."""
    logits = jnp.dot(x_ref[...], w_ref[...], preferred_element_type=jnp.float32)
    m = jnp.max(logits, axis=-1, keepdims=True)
    lse = jnp.log(jnp.sum(jnp.exp(logits - m), axis=-1, keepdims=True)) + m
    o_ref[...] = logits - lse


# --------------------------------------------------------------- wrappers ---
_PARALLEL = pltpu.CompilerParams(dimension_semantics=("parallel",))


def mha_block(x_q, x_kv, mask_bias, mask_pad, p, ln_g, ln_b, *, h, d_k, d_v):
    B, Nq, D = x_q.shape
    Nk = x_kv.shape[1]
    hk, hv = h * d_k, h * d_v
    kern = functools.partial(_mha_kernel, h=h, d_k=d_k, d_v=d_v,
                             scale=1.0 / math.sqrt(d_k))
    return pl.pallas_call(
        kern,
        out_shape=jax.ShapeDtypeStruct((B, Nq, D), jnp.float32),
        grid=(B,),
        in_specs=[
            pl.BlockSpec((1, Nq, D), lambda b: (b, 0, 0)),        # x_q
            pl.BlockSpec((1, Nk, D), lambda b: (b, 0, 0)),        # x_kv
            pl.BlockSpec((D, hk), lambda b: (0, 0)),              # wq (resident)
            pl.BlockSpec((1, hk), lambda b: (0, 0)),              # bq
            pl.BlockSpec((D, hk + hv), lambda b: (0, 0)),         # wkv (resident)
            pl.BlockSpec((1, hk + hv), lambda b: (0, 0)),         # bkv
            pl.BlockSpec((hv, D), lambda b: (0, 0)),              # wo (resident)
            pl.BlockSpec((1, D), lambda b: (0, 0)),               # bo
            pl.BlockSpec((1, Nq, Nk), lambda b: (b, 0, 0)),       # additive mask
            pl.BlockSpec((1, Nq, 1), lambda b: (b, 0, 0)),        # pad mask
            pl.BlockSpec((1, D), lambda b: (0, 0)),               # ln gamma
            pl.BlockSpec((1, D), lambda b: (0, 0)),               # ln beta
        ],
        out_specs=pl.BlockSpec((1, Nq, D), lambda b: (b, 0, 0)),
        compiler_params=_PARALLEL,
    )(x_q, x_kv, p["wq"], p["bq"].reshape(1, hk), p["wkv"],
      p["bkv"].reshape(1, hk + hv), p["wo"], p["bo"].reshape(1, D),
      mask_bias, mask_pad, ln_g.reshape(1, D), ln_b.reshape(1, D))


def ffn_block(x, mask_pad, p, *, tm):
    M, D = x.shape
    d_ff = p["w1"].shape[1]
    return pl.pallas_call(
        _ffn_kernel,
        out_shape=jax.ShapeDtypeStruct((M, D), jnp.float32),
        grid=(M // tm,),
        in_specs=[
            pl.BlockSpec((tm, D), lambda i: (i, 0)),
            pl.BlockSpec((D, d_ff), lambda i: (0, 0)),            # w1 (resident)
            pl.BlockSpec((1, d_ff), lambda i: (0, 0)),
            pl.BlockSpec((d_ff, D), lambda i: (0, 0)),            # w2 (resident)
            pl.BlockSpec((1, D), lambda i: (0, 0)),
            pl.BlockSpec((1, D), lambda i: (0, 0)),
            pl.BlockSpec((1, D), lambda i: (0, 0)),
            pl.BlockSpec((tm, 1), lambda i: (i, 0)),
        ],
        out_specs=pl.BlockSpec((tm, D), lambda i: (i, 0)),
        compiler_params=_PARALLEL,
    )(x, p["w1"], p["b1"].reshape(1, d_ff), p["w2"], p["b2"].reshape(1, D),
      p["lnf_g"].reshape(1, D), p["lnf_b"].reshape(1, D), mask_pad)


def fc_log_softmax(x, w, *, tm):
    M, D = x.shape
    V = w.shape[1]
    return pl.pallas_call(
        _fc_logsoftmax_kernel,
        out_shape=jax.ShapeDtypeStruct((M, V), jnp.float32),
        grid=(M // tm,),
        in_specs=[pl.BlockSpec((tm, D), lambda i: (i, 0)),
                  pl.BlockSpec((D, V), lambda i: (0, 0))],        # fc_w (resident)
        out_specs=pl.BlockSpec((tm, V), lambda i: (i, 0)),
        compiler_params=_PARALLEL,
    )(x, w)


# ---------------------------------------------------------- model pieces ---
def decoder_layer(x, cross, mask_pad_3d, mask_pad_flat, self_bias, enc_bias,
                  p, *, h, d_k, d_v, tm):
    B, S, D = x.shape
    # self attention (+ residual LN + pad mask, fused)
    x1 = mha_block(x, x, self_bias, mask_pad_3d, p["self_att"],
                   p["ln1_g"], p["ln1_b"], h=h, d_k=d_k, d_v=d_v)
    # cross attention on concat([enc_output, box_lastlayer]) (+ LN + mask)
    x2 = mha_block(x1, cross, enc_bias, mask_pad_3d, p["enc_att"],
                   p["ln2_g"], p["ln2_b"], h=h, d_k=d_k, d_v=d_v)
    # position-wise feed forward (+ residual LN + mask, fused)
    y = ffn_block(x2.reshape(B * S, D), mask_pad_flat, p, tm=tm)
    return y.reshape(B, S, D)


def decoder_forward(params, tokens, encoder_output, box_lastlayer,
                    mask_encoder, pos_grid, *, padding_idx, h, d_k, d_v):
    # pos_grid is forwarded to the layers as None in the reference -> unused.
    del pos_grid
    B, S = tokens.shape
    D = params["word_emb"].shape[1]
    V = params["fc_w"].shape[1]

    # pad / causal masks, built once as additive f32 biases
    mask_queries = (tokens != padding_idx).astype(jnp.float32)[..., None]   # (B,S,1)
    triu = jnp.triu(jnp.ones((S, S), jnp.float32), k=1)
    pad_cols = (tokens == padding_idx).astype(jnp.float32)[:, None, :]       # (B,1,S)
    self_masked = (triu[None] + pad_cols) > 0                                # (B,S,S)
    self_bias = jnp.where(self_masked, NEG_INF, 0.0).astype(jnp.float32)

    seq = jnp.broadcast_to(jnp.arange(1, S + 1, dtype=jnp.int32)[None, :], (B, S))
    seq = jnp.where(mask_queries[..., 0] == 0, 0, seq)

    # embedding gathers kept as JAX glue (pure indexing)
    out = params["word_emb"][tokens] + params["pos_emb"][seq]                # (B,S,D)

    # cross-attention inputs / mask (constant across layers -> hoisted)
    cross = jnp.concatenate([encoder_output, box_lastlayer], axis=1)
    box_mask = (jnp.sum(box_lastlayer, axis=-1) == 0)[:, None, :]            # (B,1,Nbox)
    enc_masked = jnp.concatenate(
        [mask_encoder.reshape(B, 1, -1), box_mask], axis=-1)                 # (B,1,Nc)
    enc_bias = jnp.where(enc_masked, NEG_INF, 0.0).astype(jnp.float32)
    enc_bias = jnp.broadcast_to(enc_bias, (B, S, enc_bias.shape[-1]))

    mask_pad_flat = mask_queries.reshape(B * S, 1)
    tm = _row_tile(B * S)

    for lp in params["layers"]:
        out = decoder_layer(out, cross, mask_queries, mask_pad_flat,
                            self_bias, enc_bias, lp, h=h, d_k=d_k, d_v=d_v, tm=tm)

    # fc (bias=False) fused with log_softmax epilogue
    return fc_log_softmax(out.reshape(B * S, D), params["fc_w"], tm=tm
                          ).reshape(B, S, V)


# ----------------------------------------------------------------- params ---
def sinusoid_encoding_table(n_pos, d_model):
    pos = jnp.arange(n_pos, dtype=jnp.float32)[:, None]
    i = jnp.arange(d_model)
    angle = pos / jnp.power(10000.0, (2 * (i // 2)).astype(jnp.float32) / d_model)
    tbl = jnp.where(i % 2 == 0, jnp.sin(angle), jnp.cos(angle))
    return tbl.at[0].set(0.0)  # padding_idx = 0 row


def init_params(key, vocab_size, max_len, n_dec, d_model, d_k, d_v, h, d_ff):
    keys = iter(jax.random.split(key, 4 + 12 * n_dec))

    def xav(shape):
        lim = math.sqrt(6.0 / (shape[0] + shape[1]))
        return jax.random.uniform(next(keys), shape, jnp.float32, -lim, lim)

    def mha_p():
        # K|V projection weights fused into one matmul operand
        wk = xav((d_model, h * d_k))
        wv = xav((d_model, h * d_v))
        return dict(
            wq=xav((d_model, h * d_k)), bq=jnp.zeros((h * d_k,), jnp.float32),
            wkv=jnp.concatenate([wk, wv], axis=1),
            bkv=jnp.zeros((h * (d_k + d_v),), jnp.float32),
            wo=xav((h * d_v, d_model)), bo=jnp.zeros((d_model,), jnp.float32),
        )

    layers = []
    for _ in range(n_dec):
        layers.append(dict(
            self_att=mha_p(), enc_att=mha_p(),
            ln1_g=jnp.ones((d_model,), jnp.float32),
            ln1_b=jnp.zeros((d_model,), jnp.float32),
            ln2_g=jnp.ones((d_model,), jnp.float32),
            ln2_b=jnp.zeros((d_model,), jnp.float32),
            w1=xav((d_model, d_ff)), b1=jnp.zeros((d_ff,), jnp.float32),
            w2=xav((d_ff, d_model)), b2=jnp.zeros((d_model,), jnp.float32),
            lnf_g=jnp.ones((d_model,), jnp.float32),
            lnf_b=jnp.zeros((d_model,), jnp.float32),
        ))

    return dict(
        word_emb=xav((vocab_size, d_model)),
        pos_emb=sinusoid_encoding_table(max_len + 1, d_model),
        layers=layers,
        fc_w=xav((d_model, vocab_size)),
    )


# ------------------------------------------------------------------- main ---
if __name__ == "__main__":
    VOCAB, MAX_LEN, N_DEC, PAD = 50, 20, 2, 0
    D_MODEL, D_K, D_V, H, D_FF = 32, 8, 8, 4, 64
    B, S, N_ENC, N_BOX = 2, 8, 10, 6

    key = jax.random.PRNGKey(0)
    k_tok, k_enc, k_box, k_par = jax.random.split(key, 4)

    params = init_params(k_par, VOCAB, MAX_LEN, N_DEC, D_MODEL, D_K, D_V, H, D_FF)

    tokens = jax.random.randint(k_tok, (B, S), 1, VOCAB, dtype=jnp.int32)
    tokens = tokens.at[0, 6:].set(PAD).at[1, 5:].set(PAD)   # trailing padding
    encoder_output = jax.random.normal(k_enc, (B, N_ENC, D_MODEL), jnp.float32)
    box_lastlayer = jax.random.normal(k_box, (B, N_BOX, D_MODEL), jnp.float32)
    mask_encoder = jnp.zeros((B, 1, 1, N_ENC), jnp.bool_)   # nothing masked
    pos_grid = None

    # TODO(synk): stateful incremental-decoding path (running_mask / running_seq)
    # is not implemented; this is the teacher-forcing forward pass.
    out = decoder_forward(params, tokens, encoder_output, box_lastlayer,
                          mask_encoder, pos_grid,
                          padding_idx=PAD, h=H, d_k=D_K, d_v=D_V)
    out = jax.block_until_ready(out)

    assert out.shape == (B, S, VOCAB), out.shape
    assert bool(jnp.all(jnp.isfinite(out)))
    # log_softmax rows must (approximately) sum to 1 in prob space
    assert bool(jnp.allclose(jnp.sum(jnp.exp(out), axis=-1), 1.0, atol=1e-3))
    print("KERNEL_OK")
</pallas_src>

<mosaic_0001>
module attributes {stable_mosaic.version = 11 : i64} {
  func.func @_mha_kernel(%arg0: i32, %arg1: memref<1x8x32xf32, #tpu.memory_space<vmem>>, %arg2: memref<1x8x32xf32, #tpu.memory_space<vmem>>, %arg3: memref<32x32xf32, #tpu.memory_space<vmem>>, %arg4: memref<1x32xf32, #tpu.memory_space<vmem>>, %arg5: memref<32x64xf32, #tpu.memory_space<vmem>>, %arg6: memref<1x64xf32, #tpu.memory_space<vmem>>, %arg7: memref<32x32xf32, #tpu.memory_space<vmem>>, %arg8: memref<1x32xf32, #tpu.memory_space<vmem>>, %arg9: memref<1x8x8xf32, #tpu.memory_space<vmem>>, %arg10: memref<1x8x1xf32, #tpu.memory_space<vmem>>, %arg11: memref<1x32xf32, #tpu.memory_space<vmem>>, %arg12: memref<1x32xf32, #tpu.memory_space<vmem>>, %arg13: memref<1x8x32xf32, #tpu.memory_space<vmem>>) attributes {dimension_semantics = [#tpu.dimension_semantics<parallel>], iteration_bounds = array<i64: 2>, scalar_prefetch = 0 : i64, scratch_operands = 0 : i64, tpu.core_type = #tpu.core_type<tc>, window_params = [{transform_indices = @transform_0, window_bounds = array<i64: 1, 8, 32>}, {transform_indices = @transform_1, window_bounds = array<i64: 1, 8, 32>}, {pipeline_mode = #tpu.pipeline_mode<synchronous>, transform_indices = @transform_2, window_bounds = array<i64: 32, 32>}, {pipeline_mode = #tpu.pipeline_mode<synchronous>, transform_indices = @transform_3, window_bounds = array<i64: 1, 32>}, {pipeline_mode = #tpu.pipeline_mode<synchronous>, transform_indices = @transform_4, window_bounds = array<i64: 32, 64>}, {pipeline_mode = #tpu.pipeline_mode<synchronous>, transform_indices = @transform_5, window_bounds = array<i64: 1, 64>}, {pipeline_mode = #tpu.pipeline_mode<synchronous>, transform_indices = @transform_6, window_bounds = array<i64: 32, 32>}, {pipeline_mode = #tpu.pipeline_mode<synchronous>, transform_indices = @transform_7, window_bounds = array<i64: 1, 32>}, {transform_indices = @transform_8, window_bounds = array<i64: 1, 8, 8>}, {transform_indices = @transform_9, window_bounds = array<i64: 1, 8, 1>}, {pipeline_mode = #tpu.pipeline_mode<synchronous>, transform_indices = @transform_10, window_bounds = array<i64: 1, 32>}, {pipeline_mode = #tpu.pipeline_mode<synchronous>, transform_indices = @transform_11, window_bounds = array<i64: 1, 32>}, {transform_indices = @transform_12, window_bounds = array<i64: 1, 8, 32>}]} {
    %c0 = arith.constant 0 : index
    %c0_0 = arith.constant 0 : index
    %c0_1 = arith.constant 0 : index
    %0 = vector.load %arg1[%c0, %c0_0, %c0_1] : memref<1x8x32xf32, #tpu.memory_space<vmem>>, vector<1x8x32xf32>
    %1 = vector.shape_cast %0 : vector<1x8x32xf32> to vector<8x32xf32>
    %c0_2 = arith.constant 0 : index
    %c0_3 = arith.constant 0 : index
    %c0_4 = arith.constant 0 : index
    %2 = vector.load %arg2[%c0_2, %c0_3, %c0_4] : memref<1x8x32xf32, #tpu.memory_space<vmem>>, vector<1x8x32xf32>
    %3 = vector.shape_cast %2 : vector<1x8x32xf32> to vector<8x32xf32>
    %c0_5 = arith.constant 0 : index
    %c0_6 = arith.constant 0 : index
    %c0_7 = arith.constant 0 : index
    %4 = vector.load %arg9[%c0_5, %c0_6, %c0_7] : memref<1x8x8xf32, #tpu.memory_space<vmem>>, vector<1x8x8xf32>
    %5 = vector.shape_cast %4 : vector<1x8x8xf32> to vector<8x8xf32>
    %c0_8 = arith.constant 0 : index
    %c0_9 = arith.constant 0 : index
    %6 = vector.load %arg3[%c0_8, %c0_9] : memref<32x32xf32, #tpu.memory_space<vmem>>, vector<32x32xf32>
    %cst = arith.constant dense<0.000000e+00> : vector<8x32xf32>
    %7 = tpu.matmul %1, %6, %cst {dimension_numbers = #tpu.dot_dimension_numbers<[1], [0], [0], [1], [0, 0, 1, 1], [], []>} : vector<8x32xf32>, vector<32x32xf32>, vector<8x32xf32> -> vector<8x32xf32>
    %c0_10 = arith.constant 0 : index
    %c0_11 = arith.constant 0 : index
    %8 = vector.load %arg4[%c0_10, %c0_11] : memref<1x32xf32, #tpu.memory_space<vmem>>, vector<1x32xf32>
    %9 = vector.broadcast %8 : vector<1x32xf32> to vector<8x32xf32>
    %10 = arith.addf %7, %9 : vector<8x32xf32>
    %c0_12 = arith.constant 0 : index
    %c0_13 = arith.constant 0 : index
    %11 = vector.load %arg5[%c0_12, %c0_13] : memref<32x64xf32, #tpu.memory_space<vmem>>, vector<32x64xf32>
    %cst_14 = arith.constant dense<0.000000e+00> : vector<8x64xf32>
    %12 = tpu.matmul %3, %11, %cst_14 {dimension_numbers = #tpu.dot_dimension_numbers<[1], [0], [0], [1], [0, 0, 1, 1], [], []>} : vector<8x32xf32>, vector<32x64xf32>, vector<8x64xf32> -> vector<8x64xf32>
    %c0_15 = arith.constant 0 : index
    %c0_16 = arith.constant 0 : index
    %13 = vector.load %arg6[%c0_15, %c0_16] : memref<1x64xf32, #tpu.memory_space<vmem>>, vector<1x64xf32>
    %14 = vector.broadcast %13 : vector<1x64xf32> to vector<8x64xf32>
    %15 = arith.addf %12, %14 : vector<8x64xf32>
    %16 = vector.extract_strided_slice %10 {offsets = [0, 0], sizes = [8, 8], strides = [1, 1]} : vector<8x32xf32> to vector<8x8xf32>
    %17 = vector.extract_strided_slice %15 {offsets = [0, 0], sizes = [8, 8], strides = [1, 1]} : vector<8x64xf32> to vector<8x8xf32>
    %18 = vector.extract_strided_slice %15 {offsets = [0, 32], sizes = [8, 8], strides = [1, 1]} : vector<8x64xf32> to vector<8x8xf32>
    %cst_17 = arith.constant dense<0.000000e+00> : vector<8x8xf32>
    %19 = tpu.matmul %16, %17, %cst_17 {dimension_numbers = #tpu.dot_dimension_numbers<[1], [1], [0], [0], [0, 0, 1, 0], [], []>} : vector<8x8xf32>, vector<8x8xf32>, vector<8x8xf32> -> vector<8x8xf32>
    %cst_18 = arith.constant 0.353553385 : f32
    %20 = vector.broadcast %cst_18 : f32 to vector<8x8xf32>
    %21 = arith.mulf %19, %20 : vector<8x8xf32>
    %22 = arith.addf %21, %5 : vector<8x8xf32>
    %cst_19 = arith.constant dense<0xFF800000> : vector<8xf32>
    %23 = vector.multi_reduction <maximumf>, %22, %cst_19 [1] : vector<8x8xf32> to vector<8xf32>
    %24 = vector.shape_cast %23 : vector<8xf32> to vector<8x1xf32>
    %25 = vector.broadcast %24 : vector<8x1xf32> to vector<8x8xf32>
    %26 = arith.subf %22, %25 : vector<8x8xf32>
    %27 = math.exp %26 : vector<8x8xf32>
    %cst_20 = arith.constant dense<0.000000e+00> : vector<8xf32>
    %28 = vector.multi_reduction <add>, %27, %cst_20 [1] : vector<8x8xf32> to vector<8xf32>
    %29 = vector.shape_cast %28 : vector<8xf32> to vector<8x1xf32>
    %30 = tpu.reciprocal %29 {approx = true} : vector<8x1xf32> -> vector<8x1xf32>
    %31 = vector.broadcast %30 : vector<8x1xf32> to vector<8x8xf32>
    %32 = arith.mulf %27, %31 : vector<8x8xf32>
    %cst_21 = arith.constant dense<0.000000e+00> : vector<8x8xf32>
    %33 = tpu.matmul %32, %18, %cst_21 {dimension_numbers = #tpu.dot_dimension_numbers<[1], [0], [0], [1], [0, 0, 1, 1], [], []>} : vector<8x8xf32>, vector<8x8xf32>, vector<8x8xf32> -> vector<8x8xf32>
    %34 = vector.extract_strided_slice %10 {offsets = [0, 8], sizes = [8, 8], strides = [1, 1]} : vector<8x32xf32> to vector<8x8xf32>
    %35 = vector.extract_strided_slice %15 {offsets = [0, 8], sizes = [8, 8], strides = [1, 1]} : vector<8x64xf32> to vector<8x8xf32>
    %36 = vector.extract_strided_slice %15 {offsets = [0, 40], sizes = [8, 8], strides = [1, 1]} : vector<8x64xf32> to vector<8x8xf32>
    %cst_22 = arith.constant dense<0.000000e+00> : vector<8x8xf32>
    %37 = tpu.matmul %34, %35, %cst_22 {dimension_numbers = #tpu.dot_dimension_numbers<[1], [1], [0], [0], [0, 0, 1, 0], [], []>} : vector<8x8xf32>, vector<8x8xf32>, vector<8x8xf32> -> vector<8x8xf32>
    %cst_23 = arith.constant 0.353553385 : f32
    %38 = vector.broadcast %cst_23 : f32 to vector<8x8xf32>
    %39 = arith.mulf %37, %38 : vector<8x8xf32>
    %40 = arith.addf %39, %5 : vector<8x8xf32>
    %cst_24 = arith.constant dense<0xFF800000> : vector<8xf32>
    %41 = vector.multi_reduction <maximumf>, %40, %cst_24 [1] : vector<8x8xf32> to vector<8xf32>
    %42 = vector.shape_cast %41 : vector<8xf32> to vector<8x1xf32>
    %43 = vector.broadcast %42 : vector<8x1xf32> to vector<8x8xf32>
    %44 = arith.subf %40, %43 : vector<8x8xf32>
    %45 = math.exp %44 : vector<8x8xf32>
    %cst_25 = arith.constant dense<0.000000e+00> : vector<8xf32>
    %46 = vector.multi_reduction <add>, %45, %cst_25 [1] : vector<8x8xf32> to vector<8xf32>
    %47 = vector.shape_cast %46 : vector<8xf32> to vector<8x1xf32>
    %48 = tpu.reciprocal %47 {approx = true} : vector<8x1xf32> -> vector<8x1xf32>
    %49 = vector.broadcast %48 : vector<8x1xf32> to vector<8x8xf32>
    %50 = arith.mulf %45, %49 : vector<8x8xf32>
    %cst_26 = arith.constant dense<0.000000e+00> : vector<8x8xf32>
    %51 = tpu.matmul %50, %36, %cst_26 {dimension_numbers = #tpu.dot_dimension_numbers<[1], [0], [0], [1], [0, 0, 1, 1], [], []>} : vector<8x8xf32>, vector<8x8xf32>, vector<8x8xf32> -> vector<8x8xf32>
    %52 = vector.extract_strided_slice %10 {offsets = [0, 16], sizes = [8, 8], strides = [1, 1]} : vector<8x32xf32> to vector<8x8xf32>
    %53 = vector.extract_strided_slice %15 {offsets = [0, 16], sizes = [8, 8], strides = [1, 1]} : vector<8x64xf32> to vector<8x8xf32>
    %54 = vector.extract_strided_slice %15 {offsets = [0, 48], sizes = [8, 8], strides = [1, 1]} : vector<8x64xf32> to vector<8x8xf32>
    %cst_27 = arith.constant dense<0.000000e+00> : vector<8x8xf32>
    %55 = tpu.matmul %52, %53, %cst_27 {dimension_numbers = #tpu.dot_dimension_numbers<[1], [1], [0], [0], [0, 0, 1, 0], [], []>} : vector<8x8xf32>, vector<8x8xf32>, vector<8x8xf32> -> vector<8x8xf32>
    %cst_28 = arith.constant 0.353553385 : f32
    %56 = vector.broadcast %cst_28 : f32 to vector<8x8xf32>
    %57 = arith.mulf %55, %56 : vector<8x8xf32>
    %58 = arith.addf %57, %5 : vector<8x8xf32>
    %cst_29 = arith.constant dense<0xFF800000> : vector<8xf32>
    %59 = vector.multi_reduction <maximumf>, %58, %cst_29 [1] : vector<8x8xf32> to vector<8xf32>
    %60 = vector.shape_cast %59 : vector<8xf32> to vector<8x1xf32>
    %61 = vector.broadcast %60 : vector<8x1xf32> to vector<8x8xf32>
    %62 = arith.subf %58, %61 : vector<8x8xf32>
    %63 = math.exp %62 : vector<8x8xf32>
    %cst_30 = arith.constant dense<0.000000e+00> : vector<8xf32>
    %64 = vector.multi_reduction <add>, %63, %cst_30 [1] : vector<8x8xf32> to vector<8xf32>
    %65 = vector.shape_cast %64 : vector<8xf32> to vector<8x1xf32>
    %66 = tpu.reciprocal %65 {approx = true} : vector<8x1xf32> -> vector<8x1xf32>
    %67 = vector.broadcast %66 : vector<8x1xf32> to vector<8x8xf32>
    %68 = arith.mulf %63, %67 : vector<8x8xf32>
    %cst_31 = arith.constant dense<0.000000e+00> : vector<8x8xf32>
    %69 = tpu.matmul %68, %54, %cst_31 {dimension_numbers = #tpu.dot_dimension_numbers<[1], [0], [0], [1], [0, 0, 1, 1], [], []>} : vector<8x8xf32>, vector<8x8xf32>, vector<8x8xf32> -> vector<8x8xf32>
    %70 = vector.extract_strided_slice %10 {offsets = [0, 24], sizes = [8, 8], strides = [1, 1]} : vector<8x32xf32> to vector<8x8xf32>
    %71 = vector.extract_strided_slice %15 {offsets = [0, 24], sizes = [8, 8], strides = [1, 1]} : vector<8x64xf32> to vector<8x8xf32>
    %72 = vector.extract_strided_slice %15 {offsets = [0, 56], sizes = [8, 8], strides = [1, 1]} : vector<8x64xf32> to vector<8x8xf32>
    %cst_32 = arith.constant dense<0.000000e+00> : vector<8x8xf32>
    %73 = tpu.matmul %70, %71, %cst_32 {dimension_numbers = #tpu.dot_dimension_numbers<[1], [1], [0], [0], [0, 0, 1, 0], [], []>} : vector<8x8xf32>, vector<8x8xf32>, vector<8x8xf32> -> vector<8x8xf32>
    %cst_33 = arith.constant 0.353553385 : f32
    %74 = vector.broadcast %cst_33 : f32 to vector<8x8xf32>
    %75 = arith.mulf %73, %74 : vector<8x8xf32>
    %76 = arith.addf %75, %5 : vector<8x8xf32>
    %cst_34 = arith.constant dense<0xFF800000> : vector<8xf32>
    %77 = vector.multi_reduction <maximumf>, %76, %cst_34 [1] : vector<8x8xf32> to vector<8xf32>
    %78 = vector.shape_cast %77 : vector<8xf32> to vector<8x1xf32>
    %79 = vector.broadcast %78 : vector<8x1xf32> to vector<8x8xf32>
    %80 = arith.subf %76, %79 : vector<8x8xf32>
    %81 = math.exp %80 : vector<8x8xf32>
    %cst_35 = arith.constant dense<0.000000e+00> : vector<8xf32>
    %82 = vector.multi_reduction <add>, %81, %cst_35 [1] : vector<8x8xf32> to vector<8xf32>
    %83 = vector.shape_cast %82 : vector<8xf32> to vector<8x1xf32>
    %84 = tpu.reciprocal %83 {approx = true} : vector<8x1xf32> -> vector<8x1xf32>
    %85 = vector.broadcast %84 : vector<8x1xf32> to vector<8x8xf32>
    %86 = arith.mulf %81, %85 : vector<8x8xf32>
    %cst_36 = arith.constant dense<0.000000e+00> : vector<8x8xf32>
    %87 = tpu.matmul %86, %72, %cst_36 {dimension_numbers = #tpu.dot_dimension_numbers<[1], [0], [0], [1], [0, 0, 1, 1], [], []>} : vector<8x8xf32>, vector<8x8xf32>, vector<8x8xf32> -> vector<8x8xf32>
    %88 = tpu.concatenate %33, %51, %69, %87 in 1 : vector<8x8xf32>, vector<8x8xf32>, vector<8x8xf32>, vector<8x8xf32> -> vector<8x32xf32>
    %c0_37 = arith.constant 0 : index
    %c0_38 = arith.constant 0 : index
    %89 = vector.load %arg7[%c0_37, %c0_38] : memref<32x32xf32, #tpu.memory_space<vmem>>, vector<32x32xf32>
    %cst_39 = arith.constant dense<0.000000e+00> : vector<8x32xf32>
    %90 = tpu.matmul %88, %89, %cst_39 {dimension_numbers = #tpu.dot_dimension_numbers<[1], [0], [0], [1], [0, 0, 1, 1], [], []>} : vector<8x32xf32>, vector<32x32xf32>, vector<8x32xf32> -> vector<8x32xf32>
    %c0_40 = arith.constant 0 : index
    %c0_41 = arith.constant 0 : index
    %91 = vector.load %arg8[%c0_40, %c0_41] : memref<1x32xf32, #tpu.memory_space<vmem>>, vector<1x32xf32>
    %92 = vector.broadcast %91 : vector<1x32xf32> to vector<8x32xf32>
    %93 = arith.addf %90, %92 : vector<8x32xf32>
    %94 = arith.addf %1, %93 : vector<8x32xf32>
    %cst_42 = arith.constant dense<0.000000e+00> : vector<8xf32>
    %95 = vector.multi_reduction <add>, %94, %cst_42 [1] : vector<8x32xf32> to vector<8xf32>
    %96 = vector.shape_cast %95 : vector<8xf32> to vector<8x1xf32>
    %cst_43 = arith.constant 3.200000e+01 : f32
    %97 = vector.broadcast %cst_43 : f32 to vector<8x1xf32>
    %98 = arith.divf %96, %97 : vector<8x1xf32>
    %99 = vector.broadcast %98 : vector<8x1xf32> to vector<8x32xf32>
    %100 = arith.subf %94, %99 : vector<8x32xf32>
    %101 = arith.mulf %100, %100 : vector<8x32xf32>
    %cst_44 = arith.constant dense<0.000000e+00> : vector<8xf32>
    %102 = vector.multi_reduction <add>, %101, %cst_44 [1] : vector<8x32xf32> to vector<8xf32>
    %103 = vector.shape_cast %102 : vector<8xf32> to vector<8x1xf32>
    %cst_45 = arith.constant 3.200000e+01 : f32
    %104 = vector.broadcast %cst_45 : f32 to vector<8x1xf32>
    %105 = arith.divf %103, %104 : vector<8x1xf32>
    %106 = vector.broadcast %98 : vector<8x1xf32> to vector<8x32xf32>
    %107 = arith.subf %94, %106 : vector<8x32xf32>
    %cst_46 = arith.constant 9.99999974E-6 : f32
    %108 = vector.broadcast %cst_46 : f32 to vector<8x1xf32>
    %109 = arith.addf %105, %108 : vector<8x1xf32>
    %110 = math.rsqrt %109 : vector<8x1xf32>
    %111 = vector.broadcast %110 : vector<8x1xf32> to vector<8x32xf32>
    %112 = arith.mulf %107, %111 : vector<8x32xf32>
    %c0_47 = arith.constant 0 : index
    %c0_48 = arith.constant 0 : index
    %113 = vector.load %arg11[%c0_47, %c0_48] : memref<1x32xf32, #tpu.memory_space<vmem>>, vector<1x32xf32>
    %114 = vector.broadcast %113 : vector<1x32xf32> to vector<8x32xf32>
    %115 = arith.mulf %112, %114 : vector<8x32xf32>
    %c0_49 = arith.constant 0 : index
    %c0_50 = arith.constant 0 : index
    %116 = vector.load %arg12[%c0_49, %c0_50] : memref<1x32xf32, #tpu.memory_space<vmem>>, vector<1x32xf32>
    %117 = vector.broadcast %116 : vector<1x32xf32> to vector<8x32xf32>
    %118 = arith.addf %115, %117 : vector<8x32xf32>
    %c0_51 = arith.constant 0 : index
    %c0_52 = arith.constant 0 : index
    %c0_53 = arith.constant 0 : index
    %119 = vector.load %arg10[%c0_51, %c0_52, %c0_53] : memref<1x8x1xf32, #tpu.memory_space<vmem>>, vector<1x8x1xf32>
    %120 = vector.shape_cast %119 : vector<1x8x1xf32> to vector<8x1xf32>
    %121 = vector.broadcast %120 : vector<8x1xf32> to vector<8x32xf32>
    %122 = arith.mulf %118, %121 : vector<8x32xf32>
    %c0_54 = arith.constant 0 : index
    %c0_55 = arith.constant 0 : index
    %c0_56 = arith.constant 0 : index
    %123 = vector.load %arg13[%c0_54, %c0_55, %c0_56] : memref<1x8x32xf32, #tpu.memory_space<vmem>>, vector<1x8x32xf32>
    %124 = vector.shape_cast %123 : vector<1x8x32xf32> to vector<8x32xf32>
    %125 = vector.shape_cast %122 : vector<8x32xf32> to vector<1x8x32xf32>
    tpu.vector_store %arg13[%c0_54, %c0_55, %c0_56], %125 {strides = array<i32>} : memref<1x8x32xf32, #tpu.memory_space<vmem>>, vector<1x8x32xf32>,
    return
  }
  func.func @transform_0(%arg0: i32) -> (i32, i32, i32) {
    %c0_i32 = arith.constant 0 : i32
    %c0_i32_0 = arith.constant 0 : i32
    %c0_i32_1 = arith.constant 0 : i32
    return %arg0, %c0_i32, %c0_i32_0 : i32, i32, i32
  }
  func.func @transform_1(%arg0: i32) -> (i32, i32, i32) {
    %c0_i32 = arith.constant 0 : i32
    %c0_i32_0 = arith.constant 0 : i32
    %c0_i32_1 = arith.constant 0 : i32
    return %arg0, %c0_i32, %c0_i32_0 : i32, i32, i32
  }
  func.func @transform_2(%arg0: i32) -> (i32, i32) {
    %c0_i32 = arith.constant 0 : i32
    %c0_i32_0 = arith.constant 0 : i32
    %c0_i32_1 = arith.constant 0 : i32
    return %c0_i32, %c0_i32_0 : i32, i32
  }
  func.func @transform_3(%arg0: i32) -> (i32, i32) {
    %c0_i32 = arith.constant 0 : i32
    %c0_i32_0 = arith.constant 0 : i32
    %c0_i32_1 = arith.constant 0 : i32
    return %c0_i32, %c0_i32_0 : i32, i32
  }
  func.func @transform_4(%arg0: i32) -> (i32, i32) {
    %c0_i32 = arith.constant 0 : i32
    %c0_i32_0 = arith.constant 0 : i32
    %c0_i32_1 = arith.constant 0 : i32
    return %c0_i32, %c0_i32_0 : i32, i32
  }
  func.func @transform_5(%arg0: i32) -> (i32, i32) {
    %c0_i32 = arith.constant 0 : i32
    %c0_i32_0 = arith.constant 0 : i32
    %c0_i32_1 = arith.constant 0 : i32
    return %c0_i32, %c0_i32_0 : i32, i32
  }
  func.func @transform_6(%arg0: i32) -> (i32, i32) {
    %c0_i32 = arith.constant 0 : i32
    %c0_i32_0 = arith.constant 0 : i32
    %c0_i32_1 = arith.constant 0 : i32
    return %c0_i32, %c0_i32_0 : i32, i32
  }
  func.func @transform_7(%arg0: i32) -> (i32, i32) {
    %c0_i32 = arith.constant 0 : i32
    %c0_i32_0 = arith.constant 0 : i32
    %c0_i32_1 = arith.constant 0 : i32
    return %c0_i32, %c0_i32_0 : i32, i32
  }
  func.func @transform_8(%arg0: i32) -> (i32, i32, i32) {
    %c0_i32 = arith.constant 0 : i32
    %c0_i32_0 = arith.constant 0 : i32
    %c0_i32_1 = arith.constant 0 : i32
    return %arg0, %c0_i32, %c0_i32_0 : i32, i32, i32
  }
  func.func @transform_9(%arg0: i32) -> (i32, i32, i32) {
    %c0_i32 = arith.constant 0 : i32
    %c0_i32_0 = arith.constant 0 : i32
    %c0_i32_1 = arith.constant 0 : i32
    return %arg0, %c0_i32, %c0_i32_0 : i32, i32, i32
  }
  func.func @transform_10(%arg0: i32) -> (i32, i32) {
    %c0_i32 = arith.constant 0 : i32
    %c0_i32_0 = arith.constant 0 : i32
    %c0_i32_1 = arith.constant 0 : i32
    return %c0_i32, %c0_i32_0 : i32, i32
  }
  func.func @transform_11(%arg0: i32) -> (i32, i32) {
    %c0_i32 = arith.constant 0 : i32
    %c0_i32_0 = arith.constant 0 : i32
    %c0_i32_1 = arith.constant 0 : i32
    return %c0_i32, %c0_i32_0 : i32, i32
  }
  func.func @transform_12(%arg0: i32) -> (i32, i32, i32) {
    %c0_i32 = arith.constant 0 : i32
    %c0_i32_0 = arith.constant 0 : i32
    %c0_i32_1 = arith.constant 0 : i32
    return %arg0, %c0_i32, %c0_i32_0 : i32, i32, i32
  }
}

</mosaic_0001>

<llo_original>
// kernel: tpu_custom_call.1
$region0: #{tpu_custom_call.1}
  #allocation0 [shape = 'u32[]', space=smem, size = 0x4, offset = 0x4, fixed_abs, tag = 'smem constant byte address 0x4 - core index']
  #allocation1 [shape = 'u32[72,128]{1,0:T(1,128)}', space=vmem, size = 0x9000, scoped, tag = 'internal scratch']
  %s0 = inlined_call_operand.vmem [shape: f32[2,8,32], index: 0, kind: input, shape index: {}]
  %s1 = inlined_call_operand.hbm [shape: f32[2,8,32], index: 1, kind: input, shape index: {}]
  %s2 = inlined_call_operand.hbm [shape: f32[32,32], index: 2, kind: input, shape index: {}]
  %s3 = inlined_call_operand.vmem [shape: f32[1,32], index: 3, kind: input, shape index: {}]
  %s4 = inlined_call_operand.hbm [shape: f32[32,64], index: 4, kind: input, shape index: {}]
  %s5 = inlined_call_operand.vmem [shape: f32[1,64], index: 5, kind: input, shape index: {}]
  %s6 = inlined_call_operand.hbm [shape: f32[32,32], index: 6, kind: input, shape index: {}]
  %s7 = inlined_call_operand.vmem [shape: f32[1,32], index: 7, kind: input, shape index: {}]
  %s8 = inlined_call_operand.hbm [shape: f32[2,8,8], index: 8, kind: input, shape index: {}]
  %s9 = inlined_call_operand.vmem [shape: f32[2,8,1], index: 9, kind: input, shape index: {}]
  %s10 = inlined_call_operand.vmem [shape: f32[1,32], index: 10, kind: input, shape index: {}]
  %s11 = inlined_call_operand.vmem [shape: f32[1,32], index: 11, kind: input, shape index: {}]
  %s12 = inlined_call_operand.hbm [shape: f32[2,8,32], index: 12, kind: output, shape index: {}]
  %s13 = sld [smem:[#allocation0]]
  $region101: #{tpu_custom_call.1} parent=0
    _
  %s15 = ssub.s32 1, %s13
  %s16 = scalar_select 0, %s15, %s13
  $region1: #{tpu_custom_call.1} parent=0
    #allocation2 [shape = 'u8[8192]{0}', space=vmem, size = 0x2000, scoped, tag = 'input window, operand 1']
    #allocation3 [shape = 's32[2]{0}', space=sflag, size = 0x8, scoped, tag = 'scoped memory for tpu_custom_call.1']
    #allocation4 [shape = 's32[2]{0}', space=sflag, size = 0x8, scoped, tag = 'scoped memory for tpu_custom_call.1']
    #allocation5 [shape = 'u8[16384]{0}', space=vmem, size = 0x4000, scoped, tag = 'input window, operand 2, single buffered']
    #allocation6 [shape = 's32[1]{0}', space=sflag, size = 0x4, scoped, tag = 'scoped memory for tpu_custom_call.1']
    #allocation7 [shape = 'u8[16384]{0}', space=vmem, size = 0x4000, scoped, tag = 'input window, operand 4, single buffered']
    #allocation8 [shape = 'u8[16384]{0}', space=vmem, size = 0x4000, scoped, tag = 'input window, operand 6, single buffered']
    #allocation9 [shape = 's32[1]{0}', space=sflag, size = 0x4, scoped, tag = 'scoped memory for tpu_custom_call.1']
    #allocation10 [shape = 'u8[8192]{0}', space=vmem, size = 0x2000, scoped, tag = 'input window, operand 8']
    #allocation11 [shape = 'u8[8192]{0}', space=vmem, size = 0x2000, scoped, tag = 'output window, operand 0']
    %17 = vsyncpa [#allocation3], 0
    %s18 = scalar_lea.sflag [#allocation3], 1
    %19 = vsyncpa %s18, 0
    %20 = vsyncpa [#allocation6], 0
    %21 = vsyncpa [#allocation9], 0
    %22 = vsyncpa [#allocation4], 0
    %s23 = scalar_lea.sflag [#allocation4], 1
    %24 = vsyncpa %s23, 0
    loop: start=0, step=1, limit=4
    $region2: #{tpu_custom_call.1} parent=1 // loop_pre_header
      _
    $region3: #{tpu_custom_call.1} parent=1 // loop_header
      %s26 = sphi 0, %s30
      %p27 = scmp.ge.s32.totalorder %s26, 4
      %s36 = sphi 0, %s38
      %s39 = sphi 0, %s36
      %s40 = sphi 0, %s39
      %s56 = sphi 0, %s40
      %s62 = sphi 0, %s64
      %s65 = sphi 0, %s62
      %s66 = sphi 0, %s65
      %s82 = sphi 0, %s66
      %s86 = sphi 0, %s86
      %s88 = sphi 0, %s86
      %s89 = sphi 0, %s88
      %s103 = sphi 0, %s89
      %s107 = sphi 0, %s107
      %s109 = sphi 0, %s107
      %s110 = sphi 0, %s109
      %s124 = sphi 0, %s110
      %s128 = sphi 0, %s128
      %s130 = sphi 0, %s128
      %s131 = sphi 0, %s130
      %s145 = sphi 0, %s131
      %s149 = sphi 0, %s149
      %s151 = sphi 0, %s149
      %s152 = sphi 0, %s151
      %s166 = sphi 0, %s152
      %s170 = sphi 0, %s170
      %s172 = sphi 0, %s170
      %s173 = sphi 0, %s172
      %s187 = sphi 0, %s173
      %s191 = sphi 0, %s191
      %s193 = sphi 0, %s191
      %s194 = sphi 0, %s193
      %s208 = sphi 0, %s194
      %s214 = sphi 0, %s216
      %s217 = sphi 0, %s214
      %s218 = sphi 0, %s217
      %s234 = sphi 0, %s218
      %s240 = sphi 0, %s242
      %s243 = sphi 0, %s240
      %s244 = sphi 0, %s243
      %s260 = sphi 0, %s244
      %s264 = sphi 0, %s264
      %s266 = sphi 0, %s264
      %s267 = sphi 0, %s266
      %s281 = sphi 0, %s267
      %s285 = sphi 0, %s285
      %s287 = sphi 0, %s285
      %s288 = sphi 0, %s287
      %s302 = sphi 0, %s288
      %s308 = sphi 0, %s310
      %s311 = sphi 0, %s308
      %s312 = sphi 0, %s311
      %s328 = sphi 0, %s312
    $region4: #{tpu_custom_call.1} parent=1 // loop_header_branch
      %29 = sbr.rel (%p27) target = $region8
    $region5: #{tpu_custom_call.1} parent=1 // loop_body
      %s31 = ssub.s32 %s26, 1
      %s32 = ssub.s32 %s26, 2
      %s33 = sadd.s32 %s26, 1
      %s34 = ssub.s32 %s26, %s33
      %p35 = scmp.eq.s32.totalorder %s34, 0
      %s37 = sadd.s32 %s36, 1
      %s38 = scalar_select %p35, %s36, %s37
      %p41 = pneg %p35
      %p42 = scmp.eq.s32.totalorder %s26, 1
      %p43 = por %p41, %p42
      %p44 = scmp.ne.s32.totalorder %s36, %s39
      %p45 = scmp.eq.s32.totalorder %s26, 0
      %p46 = por %p44, %p45
      %p47 = scmp.ne.s32.totalorder %s36, %s39
      %p48 = scmp.eq.s32.totalorder %s31, 1
      %p49 = por %p47, %p48
      %p50 = scmp.ne.s32.totalorder %s39, %s40
      %p51 = scmp.eq.s32.totalorder %s31, 0
      %p52 = por %p50, %p51
      %p53 = scmp.ne.s32.totalorder %s39, %s40
      %p54 = scmp.eq.s32.totalorder %s32, 1
      %p55 = por %p53, %p54
      %p57 = scmp.ne.s32.totalorder %s40, %s56
      %p58 = scmp.eq.s32.totalorder %s32, 0
      %p59 = por %p57, %p58
      %s60 = ssub.s32 %s26, %s33
      %p61 = scmp.eq.s32.totalorder %s60, 0
      %s63 = sadd.s32 %s62, 1
      %s64 = scalar_select %p61, %s62, %s63
      %p67 = pneg %p61
      %p68 = scmp.eq.s32.totalorder %s26, 1
      %p69 = por %p67, %p68
      %p70 = scmp.ne.s32.totalorder %s62, %s65
      %p71 = scmp.eq.s32.totalorder %s26, 0
      %p72 = por %p70, %p71
      %p73 = scmp.ne.s32.totalorder %s62, %s65
      %p74 = scmp.eq.s32.totalorder %s31, 1
      %p75 = por %p73, %p74
      %p76 = scmp.ne.s32.totalorder %s65, %s66
      %p77 = scmp.eq.s32.totalorder %s31, 0
      %p78 = por %p76, %p77
      %p79 = scmp.ne.s32.totalorder %s65, %s66
      %p80 = scmp.eq.s32.totalorder %s32, 1
      %p81 = por %p79, %p80
      %p83 = scmp.ne.s32.totalorder %s66, %s82
      %p84 = scmp.eq.s32.totalorder %s32, 0
      %p85 = por %p83, %p84
      %s87 = sadd.s32 %s86, 1
      %p90 = scmp.eq.s32.totalorder %s26, 1
      %p91 = scmp.ne.s32.totalorder %s86, %s88
      %p92 = scmp.eq.s32.totalorder %s26, 0
      %p93 = por %p91, %p92
      %p94 = scmp.ne.s32.totalorder %s86, %s88
      %p95 = scmp.eq.s32.totalorder %s31, 1
      %p96 = por %p94, %p95
      %p97 = scmp.ne.s32.totalorder %s88, %s89
      %p98 = scmp.eq.s32.totalorder %s31, 0
      %p99 = por %p97, %p98
      %p100 = scmp.ne.s32.totalorder %s88, %s89
      %p101 = scmp.eq.s32.totalorder %s32, 1
      %p102 = por %p100, %p101
      %p104 = scmp.ne.s32.totalorder %s89, %s103
      %p105 = scmp.eq.s32.totalorder %s32, 0
      %p106 = por %p104, %p105
      %s108 = sadd.s32 %s107, 1
      %p111 = scmp.eq.s32.totalorder %s26, 1
      %p112 = scmp.ne.s32.totalorder %s107, %s109
      %p113 = scmp.eq.s32.totalorder %s26, 0
      %p114 = por %p112, %p113
      %p115 = scmp.ne.s32.totalorder %s107, %s109
      %p116 = scmp.eq.s32.totalorder %s31, 1
      %p117 = por %p115, %p116
      %p118 = scmp.ne.s32.totalorder %s109, %s110
      %p119 = scmp.eq.s32.totalorder %s31, 0
      %p120 = por %p118, %p119
      %p121 = scmp.ne.s32.totalorder %s109, %s110
      %p122 = scmp.eq.s32.totalorder %s32, 1
      %p123 = por %p121, %p122
      %p125 = scmp.ne.s32.totalorder %s110, %s124
      %p126 = scmp.eq.s32.totalorder %s32, 0
      %p127 = por %p125, %p126
      %s129 = sadd.s32 %s128, 1
      %p132 = scmp.eq.s32.totalorder %s26, 1
      %p133 = scmp.ne.s32.totalorder %s128, %s130
      %p134 = scmp.eq.s32.totalorder %s26, 0
      %p135 = por %p133, %p134
      %p136 = scmp.ne.s32.totalorder %s128, %s130
      %p137 = scmp.eq.s32.totalorder %s31, 1
      %p138 = por %p136, %p137
      %p139 = scmp.ne.s32.totalorder %s130, %s131
      %p140 = scmp.eq.s32.totalorder %s31, 0
      %p141 = por %p139, %p140
      %p142 = scmp.ne.s32.totalorder %s130, %s131
      %p143 = scmp.eq.s32.totalorder %s32, 1
      %p144 = por %p142, %p143
      %p146 = scmp.ne.s32.totalorder %s131, %s145
      %p147 = scmp.eq.s32.totalorder %s32, 0
      %p148 = por %p146, %p147
      %s150 = sadd.s32 %s149, 1
      %p153 = scmp.eq.s32.totalorder %s26, 1
      %p154 = scmp.ne.s32.totalorder %s149, %s151
      %p155 = scmp.eq.s32.totalorder %s26, 0
      %p156 = por %p154, %p155
      %p157 = scmp.ne.s32.totalorder %s149, %s151
      %p158 = scmp.eq.s32.totalorder %s31, 1
      %p159 = por %p157, %p158
      %p160 = scmp.ne.s32.totalorder %s151, %s152
      %p161 = scmp.eq.s32.totalorder %s31, 0
      %p162 = por %p160, %p161
      %p163 = scmp.ne.s32.totalorder %s151, %s152
      %p164 = scmp.eq.s32.totalorder %s32, 1
      %p165 = por %p163, %p164
      %p167 = scmp.ne.s32.totalorder %s152, %s166
      %p168 = scmp.eq.s32.totalorder %s32, 0
      %p169 = por %p167, %p168
      %s171 = sadd.s32 %s170, 1
      %p174 = scmp.eq.s32.totalorder %s26, 1
      %p175 = scmp.ne.s32.totalorder %s170, %s172
      %p176 = scmp.eq.s32.totalorder %s26, 0
      %p177 = por %p175, %p176
      %p178 = scmp.ne.s32.totalorder %s170, %s172
      %p179 = scmp.eq.s32.totalorder %s31, 1
      %p180 = por %p178, %p179
      %p181 = scmp.ne.s32.totalorder %s172, %s173
      %p182 = scmp.eq.s32.totalorder %s31, 0
      %p183 = por %p181, %p182
      %p184 = scmp.ne.s32.totalorder %s172, %s173
      %p185 = scmp.eq.s32.totalorder %s32, 1
      %p186 = por %p184, %p185
      %p188 = scmp.ne.s32.totalorder %s173, %s187
      %p189 = scmp.eq.s32.totalorder %s32, 0
      %p190 = por %p188, %p189
      %s192 = sadd.s32 %s191, 1
      %p195 = scmp.eq.s32.totalorder %s26, 1
      %p196 = scmp.ne.s32.totalorder %s191, %s193
      %p197 = scmp.eq.s32.totalorder %s26, 0
      %p198 = por %p196, %p197
      %p199 = scmp.ne.s32.totalorder %s191, %s193
      %p200 = scmp.eq.s32.totalorder %s31, 1
      %p201 = por %p199, %p200
      %p202 = scmp.ne.s32.totalorder %s193, %s194
      %p203 = scmp.eq.s32.totalorder %s31, 0
      %p204 = por %p202, %p203
      %p205 = scmp.ne.s32.totalorder %s193, %s194
      %p206 = scmp.eq.s32.totalorder %s32, 1
      %p207 = por %p205, %p206
      %p209 = scmp.ne.s32.totalorder %s194, %s208
      %p210 = scmp.eq.s32.totalorder %s32, 0
      %p211 = por %p209, %p210
      %s212 = ssub.s32 %s26, %s33
      %p213 = scmp.eq.s32.totalorder %s212, 0
      %s215 = sadd.s32 %s214, 1
      %s216 = scalar_select %p213, %s214, %s215
      %p219 = pneg %p213
      %p220 = scmp.eq.s32.totalorder %s26, 1
      %p221 = por %p219, %p220
      %p222 = scmp.ne.s32.totalorder %s214, %s217
      %p223 = scmp.eq.s32.totalorder %s26, 0
      %p224 = por %p222, %p223
      %p225 = scmp.ne.s32.totalorder %s214, %s217
      %p226 = scmp.eq.s32.totalorder %s31, 1
      %p227 = por %p225, %p226
      %p228 = scmp.ne.s32.totalorder %s217, %s218
      %p229 = scmp.eq.s32.totalorder %s31, 0
      %p230 = por %p228, %p229
      %p231 = scmp.ne.s32.totalorder %s217, %s218
      %p232 = scmp.eq.s32.totalorder %s32, 1
      %p233 = por %p231, %p232
      %p235 = scmp.ne.s32.totalorder %s218, %s234
      %p236 = scmp.eq.s32.totalorder %s32, 0
      %p237 = por %p235, %p236
      %s238 = ssub.s32 %s26, %s33
      %p239 = scmp.eq.s32.totalorder %s238, 0
      %s241 = sadd.s32 %s240, 1
      %s242 = scalar_select %p239, %s240, %s241
      %p245 = pneg %p239
      %p246 = scmp.eq.s32.totalorder %s26, 1
      %p247 = por %p245, %p246
      %p248 = scmp.ne.s32.totalorder %s240, %s243
      %p249 = scmp.eq.s32.totalorder %s26, 0
      %p250 = por %p248, %p249
      %p251 = scmp.ne.s32.totalorder %s240, %s243
      %p252 = scmp.eq.s32.totalorder %s31, 1
      %p253 = por %p251, %p252
      %p254 = scmp.ne.s32.totalorder %s243, %s244
      %p255 = scmp.eq.s32.totalorder %s31, 0
      %p256 = por %p254, %p255
      %p257 = scmp.ne.s32.totalorder %s243, %s244
      %p258 = scmp.eq.s32.totalorder %s32, 1
      %p259 = por %p257, %p258
      %p261 = scmp.ne.s32.totalorder %s244, %s260
      %p262 = scmp.eq.s32.totalorder %s32, 0
      %p263 = por %p261, %p262
      %s265 = sadd.s32 %s264, 1
      %p268 = scmp.eq.s32.totalorder %s26, 1
      %p269 = scmp.ne.s32.totalorder %s264, %s266
      %p270 = scmp.eq.s32.totalorder %s26, 0
      %p271 = por %p269, %p270
      %p272 = scmp.ne.s32.totalorder %s264, %s266
      %p273 = scmp.eq.s32.totalorder %s31, 1
      %p274 = por %p272, %p273
      %p275 = scmp.ne.s32.totalorder %s266, %s267
      %p276 = scmp.eq.s32.totalorder %s31, 0
      %p277 = por %p275, %p276
      %p278 = scmp.ne.s32.totalorder %s266, %s267
      %p279 = scmp.eq.s32.totalorder %s32, 1
      %p280 = por %p278, %p279
      %p282 = scmp.ne.s32.totalorder %s267, %s281
      %p283 = scmp.eq.s32.totalorder %s32, 0
      %p284 = por %p282, %p283
      %s286 = sadd.s32 %s285, 1
      %p289 = scmp.eq.s32.totalorder %s26, 1
      %p290 = scmp.ne.s32.totalorder %s285, %s287
      %p291 = scmp.eq.s32.totalorder %s26, 0
      %p292 = por %p290, %p291
      %p293 = scmp.ne.s32.totalorder %s285, %s287
      %p294 = scmp.eq.s32.totalorder %s31, 1
      %p295 = por %p293, %p294
      %p296 = scmp.ne.s32.totalorder %s287, %s288
      %p297 = scmp.eq.s32.totalorder %s31, 0
      %p298 = por %p296, %p297
      %p299 = scmp.ne.s32.totalorder %s287, %s288
      %p300 = scmp.eq.s32.totalorder %s32, 1
      %p301 = por %p299, %p300
      %p303 = scmp.ne.s32.totalorder %s288, %s302
      %p304 = scmp.eq.s32.totalorder %s32, 0
      %p305 = por %p303, %p304
      %s306 = ssub.s32 %s26, %s33
      %p307 = scmp.eq.s32.totalorder %s306, 0
      %s309 = sadd.s32 %s308, 1
      %s310 = scalar_select %p307, %s308, %s309
      %p313 = pneg %p307
      %p314 = scmp.eq.s32.totalorder %s26, 1
      %p315 = por %p313, %p314
      %p316 = scmp.ne.s32.totalorder %s308, %s311
      %p317 = scmp.eq.s32.totalorder %s26, 0
      %p318 = por %p316, %p317
      %p319 = scmp.ne.s32.totalorder %s308, %s311
      %p320 = scmp.eq.s32.totalorder %s31, 1
      %p321 = por %p319, %p320
      %p322 = scmp.ne.s32.totalorder %s311, %s312
      %p323 = scmp.eq.s32.totalorder %s31, 0
      %p324 = por %p322, %p323
      %p325 = scmp.ne.s32.totalorder %s311, %s312
      %p326 = scmp.eq.s32.totalorder %s32, 1
      %p327 = por %p325, %p326
      %p329 = scmp.ne.s32.totalorder %s312, %s328
      %p330 = scmp.eq.s32.totalorder %s32, 0
      %p331 = por %p329, %p330
      %p332 = scmp.le.s32.totalorder 1, %s26
      %p333 = scmp.lt.s32.totalorder %s26, 3
      %p334 = pnand %p332, %p333
      %p335 = pneg %p334
      // Predicated region
      $region9: #{tpu_custom_call.1} parent=5 // pred_check
        _
      $region10: #{tpu_custom_call.1} parent=5 // pred_check_branch
        %337 = sbr.rel (%p334) target = $region12
      $region11: #{tpu_custom_call.1} parent=5 // pred_region
        %s338 = ssub.s32 %s26, 1
        // Predicated region
        $region13: #{tpu_custom_call.1} parent=11 // pred_check
          %p339 = pneg %p99
        $region14: #{tpu_custom_call.1} parent=11 // pred_check_branch
          %341 = sbr.rel (%p339) target = $region16
        $region15: #{tpu_custom_call.1} parent=11 // pred_region
          %343 = vsyncadd [#allocation6], 0
          %s344 = sshll.u32 %s2, 4
          %s345 = int_to_ptr.hbm [resolvable:$true] %s344
          %s346 = sshll.u32 [#allocation5], 4
          %s347 = int_to_ptr.vmem [resolvable:$true] %s346
          %352 = dma.hbm_to_vmem [thread:$0]  %s345, 512, %s347, [#allocation6], 128, 128, 8
        $region16: #{tpu_custom_call.1} parent=11 // pred_fallthru
          _
        // Predicated region
        $region17: #{tpu_custom_call.1} parent=11 // pred_check
          %p353 = pneg %p120
        $region18: #{tpu_custom_call.1} parent=11 // pred_check_branch
          %355 = sbr.rel (%p353) target = $region20
        $region19: #{tpu_custom_call.1} parent=11 // pred_region
          _
        $region20: #{tpu_custom_call.1} parent=11 // pred_fallthru
          _
        // Predicated region
        $region21: #{tpu_custom_call.1} parent=11 // pred_check
          %p356 = pneg %p141
        $region22: #{tpu_custom_call.1} parent=11 // pred_check_branch
          %358 = sbr.rel (%p356) target = $region24
        $region23: #{tpu_custom_call.1} parent=11 // pred_region
          %360 = vsyncadd [#allocation6], 0
          %s361 = sshll.u32 %s4, 4
          %s362 = int_to_ptr.hbm [resolvable:$true] %s361
          %s363 = sshll.u32 [#allocation7], 4
          %s364 = int_to_ptr.vmem [resolvable:$true] %s363
          %369 = dma.hbm_to_vmem [thread:$0]  %s362, 512, %s364, [#allocation6], 128, 128, 8
        $region24: #{tpu_custom_call.1} parent=11 // pred_fallthru
          _
        // Predicated region
        $region25: #{tpu_custom_call.1} parent=11 // pred_check
          %p370 = pneg %p162
        $region26: #{tpu_custom_call.1} parent=11 // pred_check_branch
          %372 = sbr.rel (%p370) target = $region28
        $region27: #{tpu_custom_call.1} parent=11 // pred_region
          _
        $region28: #{tpu_custom_call.1} parent=11 // pred_fallthru
          _
        // Predicated region
        $region29: #{tpu_custom_call.1} parent=11 // pred_check
          %p373 = pneg %p183
        $region30: #{tpu_custom_call.1} parent=11 // pred_check_branch
          %375 = sbr.rel (%p373) target = $region32
        $region31: #{tpu_custom_call.1} parent=11 // pred_region
          %377 = vsyncadd [#allocation9], 0
          %s378 = sshll.u32 %s6, 4
          %s379 = int_to_ptr.hbm [resolvable:$true] %s378
          %s380 = sshll.u32 [#allocation8], 4
          %s381 = int_to_ptr.vmem [resolvable:$true] %s380
          %386 = dma.hbm_to_vmem [thread:$0]  %s379, 512, %s381, [#allocation9], 128, 128, 8
        $region32: #{tpu_custom_call.1} parent=11 // pred_fallthru
          _
        // Predicated region
        $region33: #{tpu_custom_call.1} parent=11 // pred_check
          %p387 = pneg %p204
        $region34: #{tpu_custom_call.1} parent=11 // pred_check_branch
          %389 = sbr.rel (%p387) target = $region36
        $region35: #{tpu_custom_call.1} parent=11 // pred_region
          _
        $region36: #{tpu_custom_call.1} parent=11 // pred_fallthru
          _
        // Predicated region
        $region37: #{tpu_custom_call.1} parent=11 // pred_check
          %p390 = pneg %p277
        $region38: #{tpu_custom_call.1} parent=11 // pred_check_branch
          %392 = sbr.rel (%p390) target = $region40
        $region39: #{tpu_custom_call.1} parent=11 // pred_region
          _
        $region40: #{tpu_custom_call.1} parent=11 // pred_fallthru
          _
        // Predicated region
        $region41: #{tpu_custom_call.1} parent=11 // pred_check
          %p393 = pneg %p298
        $region42: #{tpu_custom_call.1} parent=11 // pred_check_branch
          %395 = sbr.rel (%p393) target = $region44
        $region43: #{tpu_custom_call.1} parent=11 // pred_region
          _
        $region44: #{tpu_custom_call.1} parent=11 // pred_fallthru
          _
      $region12: #{tpu_custom_call.1} parent=5 // pred_fallthru
        _
      %p396 = scmp.lt.s32.totalorder %s26, 2
      // Predicated region
      $region45: #{tpu_custom_call.1} parent=5 // pred_check
        %p397 = pneg %p396
      $region46: #{tpu_custom_call.1} parent=5 // pred_check_branch
        %399 = sbr.rel (%p397) target = $region48
      $region47: #{tpu_custom_call.1} parent=5 // pred_region
        // Predicated region
        $region49: #{tpu_custom_call.1} parent=47 // pred_check
          %p400 = pneg %p46
        $region50: #{tpu_custom_call.1} parent=47 // pred_check_branch
          %402 = sbr.rel (%p400) target = $region52
        $region51: #{tpu_custom_call.1} parent=47 // pred_region
          %p403 = scmp.lt.s32.totalorder %s26, 1
          %s404 = scalar_select %p403, %s26, 1
          %s405 = smul.addr %s404, 8
          %s406 = scalar_lea.vmem %s0, %s405
        $region52: #{tpu_custom_call.1} parent=47 // pred_fallthru
          _
        // Predicated region
        $region53: #{tpu_custom_call.1} parent=47 // pred_check
          %p407 = pneg %p72
        $region54: #{tpu_custom_call.1} parent=47 // pred_check_branch
          %409 = sbr.rel (%p407) target = $region56
        $region55: #{tpu_custom_call.1} parent=47 // pred_region
          %s410 = sand.u32 %s26, 1
          %s411 = scalar_lea.sflag [#allocation3], %s410
          %s412 = sand.u32 %s62, 1
          %s413 = smul.addr %s412, 8
          %s414 = scalar_lea.vmem [#allocation2], %s413
          %416 = vsyncadd %s411, 0
          %s417 = smul.addr %s26, 8
          %s418 = scalar_lea.hbm %s1, %s417
          %s420 = sshll.u32 %s418, 4
          %s421 = int_to_ptr.hbm [resolvable:$true] %s420
          %s422 = sshll.u32 %s414, 4
          %s423 = int_to_ptr.vmem [resolvable:$true] %s422
          %425 = dma.hbm_to_vmem [thread:$0]  %s421, 128, %s423, %s411
        $region56: #{tpu_custom_call.1} parent=47 // pred_fallthru
          _
        // Predicated region
        $region57: #{tpu_custom_call.1} parent=47 // pred_check
          %p426 = pneg %p224
        $region58: #{tpu_custom_call.1} parent=47 // pred_check_branch
          %428 = sbr.rel (%p426) target = $region60
        $region59: #{tpu_custom_call.1} parent=47 // pred_region
          %s429 = sand.u32 %s26, 1
          %s430 = scalar_lea.sflag [#allocation3], %s429
          %s431 = sand.u32 %s214, 1
          %s432 = smul.addr %s431, 8
          %s433 = scalar_lea.vmem [#allocation10], %s432
          %435 = vsyncadd %s430, 0
          %s436 = smul.addr %s26, 8
          %s437 = scalar_lea.hbm %s8, %s436
          %s439 = sshll.u32 %s437, 4
          %s440 = int_to_ptr.hbm [resolvable:$true] %s439
          %s441 = sshll.u32 %s433, 4
          %s442 = int_to_ptr.vmem [resolvable:$true] %s441
          %444 = dma.hbm_to_vmem [thread:$0]  %s440, 128, %s442, %s430
        $region60: #{tpu_custom_call.1} parent=47 // pred_fallthru
          _
        // Predicated region
        $region61: #{tpu_custom_call.1} parent=47 // pred_check
          %p445 = pneg %p250
        $region62: #{tpu_custom_call.1} parent=47 // pred_check_branch
          %447 = sbr.rel (%p445) target = $region64
        $region63: #{tpu_custom_call.1} parent=47 // pred_region
          %p448 = scmp.lt.s32.totalorder %s26, 1
          %s449 = scalar_select %p448, %s26, 1
          %s450 = smul.addr %s449, 8
          %s451 = scalar_lea.vmem %s9, %s450
        $region64: #{tpu_custom_call.1} parent=47 // pred_fallthru
          _
      $region48: #{tpu_custom_call.1} parent=5 // pred_fallthru
        _
      %p452 = scmp.le.s32.totalorder 1, %s26
      %p453 = scmp.lt.s32.totalorder %s26, 3
      %p454 = pnand %p452, %p453
      %p455 = pneg %p454
      // Predicated region
      $region65: #{tpu_custom_call.1} parent=5 // pred_check
        _
      $region66: #{tpu_custom_call.1} parent=5 // pred_check_branch
        %457 = sbr.rel (%p454) target = $region68
      $region67: #{tpu_custom_call.1} parent=5 // pred_region
        %s458 = ssub.s32 %s26, 1
        %s459 = sand.u32 %s31, 1
        %s460 = scalar_lea.sflag [#allocation3], %s459
        %s461 = sand.u32 %s65, 1
        %s462 = smul.addr %s461, 8
        %s463 = scalar_lea.vmem [#allocation2], %s462
        // Predicated region
        $region69: #{tpu_custom_call.1} parent=67 // pred_check
          %p464 = pneg %p78
        $region70: #{tpu_custom_call.1} parent=67 // pred_check_branch
          %466 = sbr.rel (%p464) target = $region72
        $region71: #{tpu_custom_call.1} parent=67 // pred_region
          %468 = dma.done %s460, 128
        $region72: #{tpu_custom_call.1} parent=67 // pred_fallthru
          _
        // Predicated region
        $region73: #{tpu_custom_call.1} parent=67 // pred_check
          %p469 = pneg %p99
        $region74: #{tpu_custom_call.1} parent=67 // pred_check_branch
          %471 = sbr.rel (%p469) target = $region76
        $region75: #{tpu_custom_call.1} parent=67 // pred_region
          %473 = dma.done [#allocation6], 512
        $region76: #{tpu_custom_call.1} parent=67 // pred_fallthru
          _
        // Predicated region
        $region77: #{tpu_custom_call.1} parent=67 // pred_check
          %p474 = pneg %p141
        $region78: #{tpu_custom_call.1} parent=67 // pred_check_branch
          %476 = sbr.rel (%p474) target = $region80
        $region79: #{tpu_custom_call.1} parent=67 // pred_region
          %478 = dma.done [#allocation6], 512
        $region80: #{tpu_custom_call.1} parent=67 // pred_fallthru
          _
        // Predicated region
        $region81: #{tpu_custom_call.1} parent=67 // pred_check
          %p479 = pneg %p183
        $region82: #{tpu_custom_call.1} parent=67 // pred_check_branch
          %481 = sbr.rel (%p479) target = $region84
        $region83: #{tpu_custom_call.1} parent=67 // pred_region
          %483 = dma.done [#allocation9], 512
        $region84: #{tpu_custom_call.1} parent=67 // pred_fallthru
          _
        %s484 = sand.u32 %s31, 1
        %s485 = scalar_lea.sflag [#allocation3], %s484
        %s486 = sand.u32 %s217, 1
        %s487 = smul.addr %s486, 8
        %s488 = scalar_lea.vmem [#allocation10], %s487
        // Predicated region
        $region85: #{tpu_custom_call.1} parent=67 // pred_check
          %p489 = pneg %p230
        $region86: #{tpu_custom_call.1} parent=67 // pred_check_branch
          %491 = sbr.rel (%p489) target = $region88
        $region87: #{tpu_custom_call.1} parent=67 // pred_region
          %493 = dma.done %s485, 128
        $region88: #{tpu_custom_call.1} parent=67 // pred_fallthru
          _
        %p494 = scmp.lt.s32.totalorder %s31, 1
        %s495 = scalar_select %p494, %s31, 1
        %s496 = smul.addr %s495, 8
        %s497 = scalar_lea.vmem %s0, %s496
        %p498 = pneg %p52
        %p499 = pneg %p49
        %s500 = sand.u32 %s31, 1
        %s501 = scalar_lea.sflag [#allocation3], %s500
        %s502 = sand.u32 %s65, 1
        %s503 = smul.addr %s502, 8
        %s504 = scalar_lea.vmem [#allocation2], %s503
        %p505 = pneg %p78
        %p506 = pneg %p75
        %p507 = pneg %p99
        %p508 = pneg %p96
        %p509 = pneg %p120
        %p510 = pneg %p117
        %p511 = pneg %p141
        %p512 = pneg %p138
        %p513 = pneg %p162
        %p514 = pneg %p159
        %p515 = pneg %p183
        %p516 = pneg %p180
        %p517 = pneg %p204
        %p518 = pneg %p201
        %s519 = sand.u32 %s31, 1
        %s520 = scalar_lea.sflag [#allocation3], %s519
        %s521 = sand.u32 %s217, 1
        %s522 = smul.addr %s521, 8
        %s523 = scalar_lea.vmem [#allocation10], %s522
        %p524 = pneg %p230
        %p525 = pneg %p227
        %p526 = scmp.lt.s32.totalorder %s31, 1
        %s527 = scalar_select %p526, %s31, 1
        %s528 = smul.addr %s527, 8
        %s529 = scalar_lea.vmem %s9, %s528
        %p530 = pneg %p256
        %p531 = pneg %p253
        %p532 = pneg %p277
        %p533 = pneg %p274
        %p534 = pneg %p298
        %p535 = pneg %p295
        %p536 = pneg %p324
        %p537 = pneg %p321
        %s538 = sand.u32 %s311, 1
        %s539 = scalar_lea.sflag [#allocation4], %s538
        %s540 = sand.u32 %s311, 1
        %s541 = smul.addr %s540, 8
        %s542 = scalar_lea.vmem [#allocation11], %s541
        %p543 = scmp.lt.s32.totalorder %s31, 1
        %s544 = scalar_select %p543, %s31, 1
        %s545 = smul.addr %s544, 8
        %s546 = scalar_lea.vmem %s0, %s545
        %p547 = scmp.lt.s32.totalorder %s31, 1
        %s548 = scalar_select %p547, %s31, 1
        %s549 = smul.addr %s548, 8
        %s550 = scalar_lea.vmem %s9, %s549
        %v551 = vld [vmem:[%s546] sm:$0xff]
        %v552 = vld [vmem:[%s463] sm:$0xff]
        %v553 = vld [vmem:[%s488] sm:$0xff]
        %v554 = vld [vmem:[#allocation5] sm:$0xff]
        %v555 = vld [vmem:[#allocation5 + $0x8] sm:$0xff]
        %v556 = vld [vmem:[#allocation5 + $0x10] sm:$0xff]
        %v557 = vld [vmem:[#allocation5 + $0x18] sm:$0xff]
        %v558 = vld [vmem:[%s3] sm:$0x1]
        %v560 = vperm.slane %v558, 0
        %vm562 = vcmask 261120
        %v564 = vsel %vm562, %v551, 0
        %566 = vmatpush.msra.mxu0 0.0
        %567 = vmatpush.msra.mxu0 0.0
        %568 = vmatpush.msra.mxu0 0.0
        %569 = vmatpush.msra.mxu0 0.0
        %570 = vmatpush.msra.mxu0 0.0
        %571 = vmatpush.msra.mxu0 0.0
        %572 = vmatpush.msra.mxu0 0.0
        %573 = vmatpush.msra.mxu0 0.0
        %574 = vmatpush.msra.mxu0 0.0
        %575 = vmatpush.msra.mxu0 0.0
        %576 = vmatpush.msra.mxu0 0.0
        %577 = vmatpush.msra.mxu0 0.0
        %578 = vmatpush.msra.mxu0 %v557
        %579 = vmatpush.msra.mxu0 %v556
        %580 = vmatpush.msra.mxu0 %v555
        %581 = vmatpush.msra.mxu0 %v554
        %582 = vmatmul.f32.gmra.mxu0 %v564
        %v583 = vpop.f32.mrf.mxu0
        %v584 = vadd.f32 %v560, %v583
        %585 = vdwg.mxu0
        %v586 = vld [vmem:[#allocation7] sm:$0xff]
        %v587 = vld [vmem:[#allocation7 + $0x8] sm:$0xff]
        %v588 = vld [vmem:[#allocation7 + $0x10] sm:$0xff]
        %v589 = vld [vmem:[#allocation7 + $0x18] sm:$0xff]
        %v590 = vld [vmem:[%s5] sm:$0x1]
        %v592 = vperm.slane %v590, 0
        %v595 = vsel %vm562, %v552, 0
        %597 = vmatpush.msra.mxu0 0.0
        %598 = vmatpush.msra.mxu0 0.0
        %599 = vmatpush.msra.mxu0 0.0
        %600 = vmatpush.msra.mxu0 0.0
        %601 = vmatpush.msra.mxu0 0.0
        %602 = vmatpush.msra.mxu0 0.0
        %603 = vmatpush.msra.mxu0 0.0
        %604 = vmatpush.msra.mxu0 0.0
        %605 = vmatpush.msra.mxu0 0.0
        %606 = vmatpush.msra.mxu0 0.0
        %607 = vmatpush.msra.mxu0 0.0
        %608 = vmatpush.msra.mxu0 0.0
        %609 = vmatpush.msra.mxu0 %v589
        %610 = vmatpush.msra.mxu0 %v588
        %611 = vmatpush.msra.mxu0 %v587
        %612 = vmatpush.msra.mxu0 %v586
        %613 = vmatmul.f32.gmra.mxu0 %v595
        %v614 = vpop.f32.mrf.mxu0
        %v615 = vadd.f32 %v592, %v614
        %616 = vdwg.mxu0
        %vm617 = vcmask 64512
        %v619 = vsel %vm617, %v584, 0
        %v622 = vsel %vm617, %v615, 0
        %624 = vmatpush.xpose.msra.mxu0 0.0
        %625 = vmatpush.xpose.msra.mxu0 0.0
        %626 = vmatpush.xpose.msra.mxu0 0.0
        %627 = vmatpush.xpose.msra.mxu0 0.0
        %628 = vmatpush.xpose.msra.mxu0 0.0
        %629 = vmatpush.xpose.msra.mxu0 0.0
        %630 = vmatpush.xpose.msra.mxu0 0.0
        %631 = vmatpush.xpose.msra.mxu0 0.0
        %632 = vmatpush.xpose.msra.mxu0 0.0
        %633 = vmatpush.xpose.msra.mxu0 0.0
        %634 = vmatpush.xpose.msra.mxu0 0.0
        %635 = vmatpush.xpose.msra.mxu0 0.0
        %636 = vmatpush.xpose.msra.mxu0 0.0
        %637 = vmatpush.xpose.msra.mxu0 0.0
        %638 = vmatpush.xpose.msra.mxu0 0.0
        %639 = vmatpush.xpose.msra.mxu0 %v622
        %640 = vmatmul.f32.gmra.mxu0 %v619
        %v641 = vpop.f32.mrf.mxu0
        %v642 = vadd.f32 0.0, %v641
        %643 = vdwg.mxu0
        %v644 = vmul.f32 %v642, 0.35355338
        %v645 = vadd.f32 %v644, %v553
        %v646 = vsel %vm617, %v645, -inf
        %647 = vmax.xlane.f32.xlu0 %v646
        %v648 = vpop.xlane.xlu0 %647
        %v649 = vsub.f32 %v645, %v648
        %v650 = vmul.f32 %v649, 1.442695
        %v651 = vpow.pop %v650
        %v652 = vsel %vm617, %v651, 0.0
        %653 = vadd.xlane.f32.xlu0 %v652
        %v654 = vpop.xlane.xlu0 %653
        %v655 = vrcp.pop %v654
        %v656 = vmul.f32 %v651, %v655
        %657 = vrot.lane.b32.xlu0 %v615, 96
        %v658 = vpop.permute.xlu0 %657
        %v661 = vsel %vm617, %v656, 0
        %663 = vmatpush.msra.mxu0 0.0
        %664 = vmatpush.msra.mxu0 0.0
        %665 = vmatpush.msra.mxu0 0.0
        %666 = vmatpush.msra.mxu0 0.0
        %667 = vmatpush.msra.mxu0 0.0
        %668 = vmatpush.msra.mxu0 0.0
        %669 = vmatpush.msra.mxu0 0.0
        %670 = vmatpush.msra.mxu0 0.0
        %671 = vmatpush.msra.mxu0 0.0
        %672 = vmatpush.msra.mxu0 0.0
        %673 = vmatpush.msra.mxu0 0.0
        %674 = vmatpush.msra.mxu0 0.0
        %675 = vmatpush.msra.mxu0 0.0
        %676 = vmatpush.msra.mxu0 0.0
        %677 = vmatpush.msra.mxu0 0.0
        %678 = vmatpush.msra.mxu0 %v658
        %679 = vmatmul.f32.gmra.mxu0 %v661
        %v680 = vpop.f32.mrf.mxu0
        %v681 = vadd.f32 0.0, %v680
        %682 = vdwg.mxu0
        %683 = vrot.lane.b32.xlu0 %v584, 120
        %v684 = vpop.permute.xlu0 %683
        %685 = vrot.lane.b32.xlu0 %v615, 120
        %v686 = vpop.permute.xlu0 %685
        %v687 = vsel %vm617, %v684, 0
        %v689 = vsel %vm617, %v686, 0
        %691 = vmatpush.xpose.msra.mxu0 0.0
        %692 = vmatpush.xpose.msra.mxu0 0.0
        %693 = vmatpush.xpose.msra.mxu0 0.0
        %694 = vmatpush.xpose.msra.mxu0 0.0
        %695 = vmatpush.xpose.msra.mxu0 0.0
        %696 = vmatpush.xpose.msra.mxu0 0.0
        %697 = vmatpush.xpose.msra.mxu0 0.0
        %698 = vmatpush.xpose.msra.mxu0 0.0
        %699 = vmatpush.xpose.msra.mxu0 0.0
        %700 = vmatpush.xpose.msra.mxu0 0.0
        %701 = vmatpush.xpose.msra.mxu0 0.0
        %702 = vmatpush.xpose.msra.mxu0 0.0
        %703 = vmatpush.xpose.msra.mxu0 0.0
        %704 = vmatpush.xpose.msra.mxu0 0.0
        %705 = vmatpush.xpose.msra.mxu0 0.0
        %706 = vmatpush.xpose.msra.mxu0 %v689
        %707 = vmatmul.f32.gmra.mxu0 %v687
        %v708 = vpop.f32.mrf.mxu0
        %v709 = vadd.f32 0.0, %v708
        %710 = vdwg.mxu0
        %v711 = vmul.f32 %v709, 0.35355338
        %v712 = vadd.f32 %v711, %v553
        %v713 = vsel %vm617, %v712, -inf
        %714 = vmax.xlane.f32.xlu0 %v713
        %v715 = vpop.xlane.xlu0 %714
        %v716 = vsub.f32 %v712, %v715
        %v717 = vmul.f32 %v716, 1.442695
        %v718 = vpow.pop %v717
        %v719 = vsel %vm617, %v718, 0.0
        %720 = vadd.xlane.f32.xlu0 %v719
        %v721 = vpop.xlane.xlu0 %720
        %v722 = vrcp.pop %v721
        %v723 = vmul.f32 %v718, %v722
        %724 = vrot.lane.b32.xlu0 %v615, 88
        %v725 = vpop.permute.xlu0 %724
        %v728 = vsel %vm617, %v723, 0
        %730 = vmatpush.msra.mxu0 0.0
        %731 = vmatpush.msra.mxu0 0.0
        %732 = vmatpush.msra.mxu0 0.0
        %733 = vmatpush.msra.mxu0 0.0
        %734 = vmatpush.msra.mxu0 0.0
        %735 = vmatpush.msra.mxu0 0.0
        %736 = vmatpush.msra.mxu0 0.0
        %737 = vmatpush.msra.mxu0 0.0
        %738 = vmatpush.msra.mxu0 0.0
        %739 = vmatpush.msra.mxu0 0.0
        %740 = vmatpush.msra.mxu0 0.0
        %741 = vmatpush.msra.mxu0 0.0
        %742 = vmatpush.msra.mxu0 0.0
        %743 = vmatpush.msra.mxu0 0.0
        %744 = vmatpush.msra.mxu0 0.0
        %745 = vmatpush.msra.mxu0 %v725
        %746 = vmatmul.f32.gmra.mxu0 %v728
        %v747 = vpop.f32.mrf.mxu0
        %v748 = vadd.f32 0.0, %v747
        %749 = vdwg.mxu0
        %750 = vrot.lane.b32.xlu0 %v584, 112
        %v751 = vpop.permute.xlu0 %750
        %752 = vrot.lane.b32.xlu0 %v615, 112
        %v753 = vpop.permute.xlu0 %752
        %v754 = vsel %vm617, %v751, 0
        %v756 = vsel %vm617, %v753, 0
        %758 = vmatpush.xpose.msra.mxu0 0.0
        %759 = vmatpush.xpose.msra.mxu0 0.0
        %760 = vmatpush.xpose.msra.mxu0 0.0
        %761 = vmatpush.xpose.msra.mxu0 0.0
        %762 = vmatpush.xpose.msra.mxu0 0.0
        %763 = vmatpush.xpose.msra.mxu0 0.0
        %764 = vmatpush.xpose.msra.mxu0 0.0
        %765 = vmatpush.xpose.msra.mxu0 0.0
        %766 = vmatpush.xpose.msra.mxu0 0.0
        %767 = vmatpush.xpose.msra.mxu0 0.0
        %768 = vmatpush.xpose.msra.mxu0 0.0
        %769 = vmatpush.xpose.msra.mxu0 0.0
        %770 = vmatpush.xpose.msra.mxu0 0.0
        %771 = vmatpush.xpose.msra.mxu0 0.0
        %772 = vmatpush.xpose.msra.mxu0 0.0
        %773 = vmatpush.xpose.msra.mxu0 %v756
        %774 = vmatmul.f32.gmra.mxu0 %v754
        %v775 = vpop.f32.mrf.mxu0
        %v776 = vadd.f32 0.0, %v775
        %777 = vdwg.mxu0
        %v778 = vmul.f32 %v776, 0.35355338
        %v779 = vadd.f32 %v778, %v553
        %v780 = vsel %vm617, %v779, -inf
        %781 = vmax.xlane.f32.xlu0 %v780
        %v782 = vpop.xlane.xlu0 %781
        %v783 = vsub.f32 %v779, %v782
        %v784 = vmul.f32 %v783, 1.442695
        %v785 = vpow.pop %v784
        %v786 = vsel %vm617, %v785, 0.0
        %787 = vadd.xlane.f32.xlu0 %v786
        %v788 = vpop.xlane.xlu0 %787
        %v789 = vrcp.pop %v788
        %v790 = vmul.f32 %v785, %v789
        %791 = vrot.lane.b32.xlu0 %v615, 80
        %v792 = vpop.permute.xlu0 %791
        %v795 = vsel %vm617, %v790, 0
        %797 = vmatpush.msra.mxu0 0.0
        %798 = vmatpush.msra.mxu0 0.0
        %799 = vmatpush.msra.mxu0 0.0
        %800 = vmatpush.msra.mxu0 0.0
        %801 = vmatpush.msra.mxu0 0.0
        %802 = vmatpush.msra.mxu0 0.0
        %803 = vmatpush.msra.mxu0 0.0
        %804 = vmatpush.msra.mxu0 0.0
        %805 = vmatpush.msra.mxu0 0.0
        %806 = vmatpush.msra.mxu0 0.0
        %807 = vmatpush.msra.mxu0 0.0
        %808 = vmatpush.msra.mxu0 0.0
        %809 = vmatpush.msra.mxu0 0.0
        %810 = vmatpush.msra.mxu0 0.0
        %811 = vmatpush.msra.mxu0 0.0
        %812 = vmatpush.msra.mxu0 %v792
        %813 = vmatmul.f32.gmra.mxu0 %v795
        %v814 = vpop.f32.mrf.mxu0
        %v815 = vadd.f32 0.0, %v814
        %816 = vdwg.mxu0
        %817 = vrot.lane.b32.xlu0 %v584, 104
        %v818 = vpop.permute.xlu0 %817
        %819 = vrot.lane.b32.xlu0 %v615, 104
        %v820 = vpop.permute.xlu0 %819
        %v821 = vsel %vm617, %v818, 0
        %v823 = vsel %vm617, %v820, 0
        %825 = vmatpush.xpose.msra.mxu0 0.0
        %826 = vmatpush.xpose.msra.mxu0 0.0
        %827 = vmatpush.xpose.msra.mxu0 0.0
        %828 = vmatpush.xpose.msra.mxu0 0.0
        %829 = vmatpush.xpose.msra.mxu0 0.0
        %830 = vmatpush.xpose.msra.mxu0 0.0
        %831 = vmatpush.xpose.msra.mxu0 0.0
        %832 = vmatpush.xpose.msra.mxu0 0.0
        %833 = vmatpush.xpose.msra.mxu0 0.0
        %834 = vmatpush.xpose.msra.mxu0 0.0
        %835 = vmatpush.xpose.msra.mxu0 0.0
        %836 = vmatpush.xpose.msra.mxu0 0.0
        %837 = vmatpush.xpose.msra.mxu0 0.0
        %838 = vmatpush.xpose.msra.mxu0 0.0
        %839 = vmatpush.xpose.msra.mxu0 0.0
        %840 = vmatpush.xpose.msra.mxu0 %v823
        %841 = vmatmul.f32.gmra.mxu0 %v821
        %v842 = vpop.f32.mrf.mxu0
        %v843 = vadd.f32 0.0, %v842
        %844 = vdwg.mxu0
        %v845 = vmul.f32 %v843, 0.35355338
        %v846 = vadd.f32 %v845, %v553
        %v847 = vsel %vm617, %v846, -inf
        %848 = vmax.xlane.f32.xlu0 %v847
        %v849 = vpop.xlane.xlu0 %848
        %v850 = vsub.f32 %v846, %v849
        %v851 = vmul.f32 %v850, 1.442695
        %v852 = vpow.pop %v851
        %v853 = vsel %vm617, %v852, 0.0
        %854 = vadd.xlane.f32.xlu0 %v853
        %v855 = vpop.xlane.xlu0 %854
        %v856 = vrcp.pop %v855
        %v857 = vmul.f32 %v852, %v856
        %858 = vrot.lane.b32.xlu0 %v615, 72
        %v859 = vpop.permute.xlu0 %858
        %v862 = vsel %vm617, %v857, 0
        %864 = vmatpush.msra.mxu0 0.0
        %865 = vmatpush.msra.mxu0 0.0
        %866 = vmatpush.msra.mxu0 0.0
        %867 = vmatpush.msra.mxu0 0.0
        %868 = vmatpush.msra.mxu0 0.0
        %869 = vmatpush.msra.mxu0 0.0
        %870 = vmatpush.msra.mxu0 0.0
        %871 = vmatpush.msra.mxu0 0.0
        %872 = vmatpush.msra.mxu0 0.0
        %873 = vmatpush.msra.mxu0 0.0
        %874 = vmatpush.msra.mxu0 0.0
        %875 = vmatpush.msra.mxu0 0.0
        %876 = vmatpush.msra.mxu0 0.0
        %877 = vmatpush.msra.mxu0 0.0
        %878 = vmatpush.msra.mxu0 0.0
        %879 = vmatpush.msra.mxu0 %v859
        %880 = vmatmul.f32.gmra.mxu0 %v862
        %v881 = vpop.f32.mrf.mxu0
        %v882 = vadd.f32 0.0, %v881
        %883 = vdwg.mxu0
        %885 = vrot.lane.b32.xlu0 %v748, 8
        %v886 = vpop.permute.xlu0 %885
        %889 = vrot.lane.b32.xlu0 %v815, 16
        %v890 = vpop.permute.xlu0 %889
        %893 = vrot.lane.b32.xlu0 %v882, 24
        %v894 = vpop.permute.xlu0 %893
        %v896 = vsel %vm617, %v681, %v886
        %vm897 = vcmask 130048
        %v898 = vsel %vm897, %v896, %v890
        %vm899 = vcmask 195584
        %v900 = vsel %vm899, %v898, %v894
        %v901 = vld [vmem:[#allocation8] sm:$0xff]
        %v902 = vld [vmem:[#allocation8 + $0x8] sm:$0xff]
        %v903 = vld [vmem:[#allocation8 + $0x10] sm:$0xff]
        %v904 = vld [vmem:[#allocation8 + $0x18] sm:$0xff]
        %v905 = vld [vmem:[%s7] sm:$0x1]
        %v907 = vperm.slane %v905, 0
        %v910 = vsel %vm562, %v900, 0
        %912 = vmatpush.msra.mxu0 0.0
        %913 = vmatpush.msra.mxu0 0.0
        %914 = vmatpush.msra.mxu0 0.0
        %915 = vmatpush.msra.mxu0 0.0
        %916 = vmatpush.msra.mxu0 0.0
        %917 = vmatpush.msra.mxu0 0.0
        %918 = vmatpush.msra.mxu0 0.0
        %919 = vmatpush.msra.mxu0 0.0
        %920 = vmatpush.msra.mxu0 0.0
        %921 = vmatpush.msra.mxu0 0.0
        %922 = vmatpush.msra.mxu0 0.0
        %923 = vmatpush.msra.mxu0 0.0
        %924 = vmatpush.msra.mxu0 %v904
        %925 = vmatpush.msra.mxu0 %v903
        %926 = vmatpush.msra.mxu0 %v902
        %927 = vmatpush.msra.mxu0 %v901
        %928 = vmatmul.f32.gmra.mxu0 %v910
        %v929 = vpop.f32.mrf.mxu0
        %v930 = vadd.f32 %v907, %v929
        %931 = vdwg.mxu0
        %v932 = vadd.f32 %v551, %v930
        %v933 = vsel %vm562, %v932, 0.0
        %934 = vadd.xlane.f32.xlu0 %v933
        %v935 = vpop.xlane.xlu0 %934
        %v936 = vrcp.pop 32.0
        %v937 = vmul.f32 32.0, %v936
        %v938 = vsub.f32 1.0, %v937
        %v939 = vmul.f32 %v936, %v938
        %v940 = vadd.f32 %v936, %v939
        %vm941 = vweird.f32 %v936
        %v942 = vsel %vm941, %v936, %v940
        %v943 = vmul.f32 %v935, %v942
        %v944 = vsub.f32 %v932, %v943
        %v945 = vmul.f32 %v944, %v944
        %v946 = vsel %vm562, %v945, 0.0
        %947 = vadd.xlane.f32.xlu0 %v946
        %v948 = vpop.xlane.xlu0 %947
        %v949 = vmul.f32 %v948, %v942
        %v950 = vadd.f32 %v949, 1e-05
        %v951 = vrsqrt.pop %v950
        %v952 = vmul.f32 %v951, %v950
        %v953 = vmul.f32 %v952, %v951
        %v954 = vmul.f32 0.5, %v953
        %v955 = vsub.f32 1.5, %v954
        %v956 = vmul.f32 %v951, %v955
        %vm957 = vweird.f32 %v950
        %vm958 = vweird.f32 %v951
        %vm959 = vmor %vm957, %vm958
        %v960 = vsel %vm959, %v951, %v956
        %v961 = vmul.f32 %v944, %v960
        %v962 = vld [vmem:[%s10] sm:$0x1]
        %v964 = vperm.slane %v962, 0
        %v966 = vmul.f32 %v961, %v964
        %v967 = vld [vmem:[%s11] sm:$0x1]
        %v969 = vperm.slane %v967, 0
        %v971 = vadd.f32 %v966, %v969
        %v972 = vld [vmem:[%s550] sm:$0xff]
        %974 = vset.pattern.permute.xlu0 0
        %975 = vperm.xlu0 %974, %v972
        %v976 = vpop.permute.xlu0 %975
        %v978 = vmul.f32 %v971, %v976
        %979 = vst.msk [vmem:[%s542] sm:$0xff] %vm562, %v978
        %s980 = sand.u32 %s311, 1
        %s981 = scalar_lea.sflag [#allocation4], %s980
        %s982 = sand.u32 %s311, 1
        %s983 = smul.addr %s982, 8
        %s984 = scalar_lea.vmem [#allocation11], %s983
        // Predicated region
        $region89: #{tpu_custom_call.1} parent=67 // pred_check
          %p985 = pneg %p321
        $region90: #{tpu_custom_call.1} parent=67 // pred_check_branch
          %987 = sbr.rel (%p985) target = $region92
        $region91: #{tpu_custom_call.1} parent=67 // pred_region
          %989 = vsyncadd %s981, 0
          %s990 = smul.addr %s31, 8
          %s991 = scalar_lea.hbm %s12, %s990
          %s993 = sshll.u32 %s984, 4
          %s994 = int_to_ptr.vmem [resolvable:$true] %s993
          %s995 = sshll.u32 %s991, 4
          %s996 = int_to_ptr.hbm [resolvable:$true] %s995
          %998 = dma.vmem_to_hbm [thread:$0]  %s994, 128, %s996, %s981
        $region92: #{tpu_custom_call.1} parent=67 // pred_fallthru
          _
      $region68: #{tpu_custom_call.1} parent=5 // pred_fallthru
        _
      %p999 = scmp.le.s32.totalorder 2, %s26
      // Predicated region
      $region93: #{tpu_custom_call.1} parent=5 // pred_check
        %p1000 = pneg %p999
      $region94: #{tpu_custom_call.1} parent=5 // pred_check_branch
        %1002 = sbr.rel (%p1000) target = $region96
      $region95: #{tpu_custom_call.1} parent=5 // pred_region
        %s1003 = ssub.s32 %s26, 2
        // Predicated region
        $region97: #{tpu_custom_call.1} parent=95 // pred_check
          %p1004 = pneg %p327
        $region98: #{tpu_custom_call.1} parent=95 // pred_check_branch
          %1006 = sbr.rel (%p1004) target = $region100
        $region99: #{tpu_custom_call.1} parent=95 // pred_region
          %s1007 = sand.u32 %s312, 1
          %s1008 = scalar_lea.sflag [#allocation4], %s1007
          %s1009 = sand.u32 %s312, 1
          %s1010 = smul.addr %s1009, 8
          %s1011 = scalar_lea.vmem [#allocation11], %s1010
          %1013 = dma.done %s1008, 128
        $region100: #{tpu_custom_call.1} parent=95 // pred_fallthru
          _
      $region96: #{tpu_custom_call.1} parent=5 // pred_fallthru
        _
    $region6: #{tpu_custom_call.1} parent=1 // loop_footer
      %s30 = sadd.s32 1, %s26
    $region7: #{tpu_custom_call.1} parent=1 // loop_footer_branch
      %25 = sbr.rel target = $region3
    $region8: #{tpu_custom_call.1} parent=1 // loop_exit
      _
    %1014 = vsyncpa [#allocation3], 1
    %s1015 = scalar_lea.sflag [#allocation3], 1
    %1016 = vsyncpa %s1015, 1
    %1017 = vsyncpa [#allocation6], 1
    %1018 = vsyncpa [#allocation9], 1
    %1019 = vsyncpa [#allocation4], 1
    %s1020 = scalar_lea.sflag [#allocation4], 1
    %1021 = vsyncpa %s1020, 1

</llo_original>
